<compile_context>
chip_gen: v5e
topology: v5e:2x2
jax: 0.10.0
libtpu: 0.0.40
codegen_flags: <defaults>
</compile_context>

<pallas_src>
import math

import jax
import jax.numpy as jnp
from jax import lax
from jax.experimental import pallas as pl
from jax.experimental.pallas import tpu as pltpu


def _round_up(x, m):
    return ((x + m - 1) // m) * m


def _pick_divisor(n, candidates, fallback):
    for cand in candidates:
        if cand <= n and n % cand == 0:
            return cand
    return fallback


def _pick_batch_tile(bp):
    """bp is the padded batch (multiple of 8). Largest multiple-of-8 tile <=256
    that divides bp; split once when each half still fills >=32 MXU rows so the
    'parallel' batch axis has >=2 programs (v7x has 2 TensorCores)."""
    tile = bp
    for cand in (256, 128, 64, 32, 16, 8):
        if cand <= bp and bp % cand == 0:
            tile = cand
            break
    if bp // tile < 2 and tile >= 64 and tile % 16 == 0:
        tile //= 2
    return tile


def _vmem_limit(estimate_bytes):
    """Generation-aware VMEM cap: ~3/4 of physical per-TensorCore VMEM
    (≈48 MiB on v7x, ≈96 MiB on v5e/v6e), with 4x headroom over the static
    tile-footprint estimate and a 16 MiB floor."""
    try:
        phys = int(pltpu.get_tpu_info().vmem_capacity_bytes)
    except Exception:
        phys = 64 * 1024 * 1024   # conservative fallback = v7x per-TC VMEM
    cap = (phys * 3) // 4
    return int(min(max(4 * estimate_bytes, 16 * 1024 * 1024), cap))


# --------------------------------------------------------------------------
# Fused kernel: input projection + serial LSTM recurrence
#               + (BN-folded) Linear + LogSoftmax
# --------------------------------------------------------------------------
def _lstm_fused_kernel(emb_ref, w_ih_ref, w_hh_ref, fc_w_ref, fc_b_ref, out_ref,
                       h_ref, c_ref, gx_ref):
    # emb_ref:  (t_chunk, b_tile, D) bf16  streamed embedding chunk
    # w_ih_ref: (D, 4*Hp)  bf16  resident input-projection weight
    # w_hh_ref: (Hp, 4*Hp) bf16  resident recurrent weight
    # fc_w_ref: (Hp, NCp)  bf16  resident, BatchNorm folded in
    # fc_b_ref: (1, NCp)   f32   resident, BatchNorm folded in; pad lanes = -1e30
    # out_ref:  (b_tile, NCp) f32 resident across the time grid axis
    # h_ref, c_ref: (b_tile, Hp) f32 scratch carried across time chunks
    # gx_ref:   (t_chunk, b_tile, 4*Hp) f32 scratch: this chunk's x @ W_ih
    t_idx = pl.program_id(1)
    t_chunk = emb_ref.shape[0]
    hp = h_ref.shape[1]

    @pl.when(t_idx == 0)
    def _():
        h_ref[...] = jnp.zeros_like(h_ref)
        c_ref[...] = jnp.zeros_like(c_ref)

    # Input projection for the whole chunk, off the serial dependency chain:
    # t_chunk small (b_tile, D) @ (D, 4*Hp) MXU matmuls into VMEM scratch.
    for s in range(t_chunk):                      # static unrolled loop
        gx_ref[s] = jnp.dot(emb_ref[s], w_ih_ref[...],
                            preferred_element_type=jnp.float32)

    def step(s, carry):
        h, c = carry
        # Only the recurrent dot sits on the serial chain.  W_hh is re-read
        # from VMEM each step (cheap) instead of being held live as ~32 vregs
        # across the whole unrolled loop.
        gates = gx_ref[s] + jnp.dot(h.astype(jnp.bfloat16), w_hh_ref[...],
                                    preferred_element_type=jnp.float32)
        # Lane-group aligned gate slabs (hp is a multiple of 128); PyTorch order i,f,g,o.
        i = jax.nn.sigmoid(gates[:, 0 * hp:1 * hp])
        f = jax.nn.sigmoid(gates[:, 1 * hp:2 * hp])
        g = jnp.tanh(gates[:, 2 * hp:3 * hp])
        o = jax.nn.sigmoid(gates[:, 3 * hp:4 * hp])
        c_new = f * c + i * g
        h_new = o * jnp.tanh(c_new)
        return h_new, c_new

    h, c = lax.fori_loop(0, t_chunk, step, (h_ref[...], c_ref[...]), unroll=True)
    h_ref[...] = h
    c_ref[...] = c

    @pl.when(t_idx == pl.num_programs(1) - 1)
    def _():
        # FC (eval-mode BatchNorm already folded in) + LogSoftmax.
        # Dropout is identity in eval mode.
        z = jnp.dot(h.astype(jnp.bfloat16), fc_w_ref[...],
                    preferred_element_type=jnp.float32) + fc_b_ref[...]
        m = jnp.max(z, axis=-1, keepdims=True)
        lse = jnp.log(jnp.sum(jnp.exp(z - m), axis=-1, keepdims=True)) + m
        out_ref[...] = z - lse


# --------------------------------------------------------------------------
# Wrapper
# --------------------------------------------------------------------------
def lstm_model_forward(tokens, params):
    """tokens: (B, T) int32.  Returns (B, NC) float32 log-probabilities."""
    B, T = tokens.shape
    lut = params["lut"]                     # (vsz+1, D) f32
    w_ih = params["w_ih_p"]                 # (D, 4*Hp)  bf16, gate-padded
    w_hh = params["w_hh_p"]                 # (Hp, 4*Hp) bf16, gate-padded
    fc_w = params["fc_w_p"]                 # (Hp, NCp)  bf16, BN folded
    fc_b = params["fc_b_p"]                 # (1, NCp)   f32,  BN folded, pad = -1e30
    nc = params["nc"]
    D = lut.shape[1]
    Hp = w_hh.shape[0]
    G = w_hh.shape[1]                       # 4 * Hp
    NCp = fc_w.shape[1]

    # Pad batch to a multiple of 8 (sublane-dense tiles) and time to a multiple
    # of the chunk size.  Time is padded at the FRONT with zero embeddings:
    # with zero initial state, a zero-input (bias-free) LSTM step gives
    # c_new = 0.5*0 + 0.5*tanh(0) = 0 and h_new = 0.5*tanh(0) = 0, so leading
    # pad steps leave (h, c) exactly zero and the final hidden state unchanged.
    Bp = _round_up(B, 8)
    b_tile = _pick_batch_tile(Bp)
    Tp = _round_up(T, 8)
    t_chunk = _pick_divisor(Tp, (32, 16, 8), 8)

    # Embedding gather directly into time-major layout: transpose the tiny
    # (B, T) token matrix, never the (B, T, D) activation.
    emb_tm = jnp.take(lut, tokens.T, axis=0).astype(jnp.bfloat16)    # (T, B, D)
    if Bp != B:
        emb_tm = jnp.pad(emb_tm, ((0, 0), (0, Bp - B), (0, 0)))
    if Tp != T:
        emb_tm = jnp.pad(emb_tm, ((Tp - T, 0), (0, 0), (0, 0)))

    vmem_est = (2 * t_chunk * b_tile * D * 2       # streamed emb chunk (x2 buffers)
                + 2 * D * G * 2                    # resident W_ih
                + 2 * Hp * G * 2                   # resident W_hh
                + 2 * Hp * NCp * 2 + 2 * NCp * 4   # resident FC weight / bias
                + 2 * b_tile * NCp * 4             # output
                + 2 * b_tile * Hp * 4              # h/c scratch
                + t_chunk * b_tile * G * 4)        # gx scratch

    out_pad = pl.pallas_call(
        _lstm_fused_kernel,
        out_shape=jax.ShapeDtypeStruct((Bp, NCp), jnp.float32),
        grid=(Bp // b_tile, Tp // t_chunk),
        in_specs=[
            pl.BlockSpec((t_chunk, b_tile, D), lambda b, t: (t, b, 0)),
            pl.BlockSpec((D, G), lambda b, t: (0, 0)),
            pl.BlockSpec((Hp, G), lambda b, t: (0, 0)),
            pl.BlockSpec((Hp, NCp), lambda b, t: (0, 0)),
            pl.BlockSpec((1, NCp), lambda b, t: (0, 0)),
        ],
        out_specs=pl.BlockSpec((b_tile, NCp), lambda b, t: (b, 0)),
        scratch_shapes=[pltpu.VMEM((b_tile, Hp), jnp.float32),
                        pltpu.VMEM((b_tile, Hp), jnp.float32),
                        pltpu.VMEM((t_chunk, b_tile, G), jnp.float32)],
        compiler_params=pltpu.CompilerParams(
            dimension_semantics=("parallel", "arbitrary"),
            vmem_limit_bytes=_vmem_limit(vmem_est)),
    )(emb_tm, w_ih, w_hh, fc_w, fc_b)

    return out_pad[:B, :nc]


# --------------------------------------------------------------------------
# Parameters
# --------------------------------------------------------------------------
def init_params(key, vsz, dsz, hsz, nc, unif=0.25):
    """PyTorch-equivalent parameters (unpadded f32); LSTM weights pre-transposed
    to (D, 4H)/(H, 4H) with PyTorch gate order [i, f, g, o] along the 4H axis."""
    k_lut, k_wih, k_whh, k_fcw, k_fcb = jax.random.split(key, 5)
    bound = 1.0 / math.sqrt(hsz)
    return {
        "lut": jax.random.normal(k_lut, (vsz + 1, dsz), jnp.float32) * 0.1,
        "w_ih": jax.random.uniform(k_wih, (dsz, 4 * hsz), jnp.float32, -unif, unif),
        "w_hh": jax.random.uniform(k_whh, (hsz, 4 * hsz), jnp.float32, -unif, unif),
        # BatchNorm1d defaults (fresh module, eval mode): gamma=1, beta=0, mean=0, var=1.
        "bn_gamma": jnp.ones((hsz,), jnp.float32),
        "bn_beta": jnp.zeros((hsz,), jnp.float32),
        "bn_mean": jnp.zeros((hsz,), jnp.float32),
        "bn_var": jnp.ones((hsz,), jnp.float32),
        "fc_w": jax.random.uniform(k_fcw, (hsz, nc), jnp.float32, -bound, bound),
        "fc_b": jax.random.uniform(k_fcb, (nc,), jnp.float32, -bound, bound),
    }


def prepare_params(raw, eps=1e-5):
    """One-time prep: fold eval-mode BatchNorm into the FC layer, pad hidden and
    class dims to lane-dense multiples of 128, cast MXU operands to bf16."""
    hsz = raw["w_hh"].shape[0]
    nc = raw["fc_w"].shape[1]
    hp = _round_up(hsz, 128)
    ncp = _round_up(nc, 128)

    def pad_gate_cols(w):
        # (rows, 4*hsz) -> (rows, 4*hp): each gate slab starts on a 128-lane boundary.
        out = jnp.zeros((w.shape[0], 4 * hp), jnp.float32)
        for g in range(4):
            out = out.at[:, g * hp:g * hp + hsz].set(w[:, g * hsz:(g + 1) * hsz])
        return out

    w_ih_p = pad_gate_cols(raw["w_ih"])                                   # (D, 4*hp)
    w_hh_p = jnp.zeros((hp, 4 * hp), jnp.float32).at[:hsz].set(
        pad_gate_cols(raw["w_hh"]))                                       # (hp, 4*hp)

    # Fold y = (h - mean) * gamma * rsqrt(var + eps) + beta into the FC layer.
    scale = raw["bn_gamma"] * lax.rsqrt(raw["bn_var"] + eps)              # (hsz,)
    fc_w_f = raw["fc_w"] * scale[:, None]                                 # (hsz, nc)
    fc_b_f = raw["fc_b"] + (raw["bn_beta"] - raw["bn_mean"] * scale) @ raw["fc_w"]

    fc_w_p = jnp.zeros((hp, ncp), jnp.float32).at[:hsz, :nc].set(fc_w_f)
    # Padded class lanes get a huge negative bias so they vanish in log-softmax.
    fc_b_p = jnp.full((1, ncp), -1e30, jnp.float32).at[0, :nc].set(fc_b_f)

    fc_w_bf16 = fc_w_p.astype(jnp.bfloat16)
    # The -1e30 pad-bias trick is only inert because padded FC columns/rows are
    # exactly zero after the bf16 cast; keep this invariant checked.
    assert bool(jnp.all(fc_w_bf16[:, nc:] == 0)) and bool(jnp.all(fc_w_bf16[hsz:, :] == 0))

    return {
        "lut": raw["lut"],
        "w_ih_p": w_ih_p.astype(jnp.bfloat16),
        "w_hh_p": w_hh_p.astype(jnp.bfloat16),
        "fc_w_p": fc_w_bf16,
        "fc_b_p": fc_b_p,
        "nc": nc,
    }


if __name__ == "__main__":
    B, T, VSZ, DSZ, HSZ, NC = 8, 8, 50, 32, 32, 4

    key = jax.random.PRNGKey(0)
    k_params, k_tokens = jax.random.split(key)

    raw = init_params(k_params, VSZ, DSZ, HSZ, NC, unif=0.25)
    params = prepare_params(raw)
    tokens = jax.random.randint(k_tokens, (B, T), 0, VSZ + 1, dtype=jnp.int32)

    log_probs = jax.block_until_ready(lstm_model_forward(tokens, params))

    assert log_probs.shape == (B, NC)
    assert log_probs.dtype == jnp.float32
    # log-softmax rows must sum to ~1 in probability space
    assert bool(jnp.all(jnp.abs(jnp.sum(jnp.exp(log_probs), axis=-1) - 1.0) < 1e-3))

    print("KERNEL_OK")
</pallas_src>

<mosaic_0001>
module attributes {stable_mosaic.version = 11 : i64} {
  func.func @_lstm_fused_kernel(%arg0: i32, %arg1: i32, %arg2: memref<8x8x32xbf16, #tpu.memory_space<vmem>>, %arg3: memref<32x512xbf16, #tpu.memory_space<vmem>>, %arg4: memref<128x512xbf16, #tpu.memory_space<vmem>>, %arg5: memref<128x128xbf16, #tpu.memory_space<vmem>>, %arg6: memref<1x128xf32, #tpu.memory_space<vmem>>, %arg7: memref<8x128xf32, #tpu.memory_space<vmem>>, %arg8: memref<8x128xf32, #tpu.memory_space<vmem>>, %arg9: memref<8x128xf32, #tpu.memory_space<vmem>>, %arg10: memref<8x8x512xf32, #tpu.memory_space<vmem>>) attributes {dimension_semantics = [#tpu.dimension_semantics<parallel>, #tpu.dimension_semantics<arbitrary>], iteration_bounds = array<i64: 1, 1>, scalar_prefetch = 0 : i64, scratch_operands = 3 : i64, tpu.core_type = #tpu.core_type<tc>, window_params = [{transform_indices = @transform_0, window_bounds = array<i64: 8, 8, 32>}, {pipeline_mode = #tpu.pipeline_mode<synchronous>, transform_indices = @transform_1, window_bounds = array<i64: 32, 512>}, {pipeline_mode = #tpu.pipeline_mode<synchronous>, transform_indices = @transform_2, window_bounds = array<i64: 128, 512>}, {pipeline_mode = #tpu.pipeline_mode<synchronous>, transform_indices = @transform_3, window_bounds = array<i64: 128, 128>}, {pipeline_mode = #tpu.pipeline_mode<synchronous>, transform_indices = @transform_4, window_bounds = array<i64: 1, 128>}, {transform_indices = @transform_5, window_bounds = array<i64: 8, 128>}]} {
    %c0_i32 = arith.constant 0 : i32
    %0 = arith.cmpi eq, %arg1, %c0_i32 : i32
    %1 = arith.extui %0 : i1 to i32
    %c0_i32_0 = arith.constant 0 : i32
    %2 = arith.cmpi ne, %1, %c0_i32_0 : i32
    scf.if %2 {
      %cst_139 = arith.constant 0.000000e+00 : f32
      %322 = vector.broadcast %cst_139 : f32 to vector<8x128xf32>
      %c0_140 = arith.constant 0 : index
      %c0_141 = arith.constant 0 : index
      %323 = vector.load %arg8[%c0_140, %c0_141] : memref<8x128xf32, #tpu.memory_space<vmem>>, vector<8x128xf32>
      tpu.vector_store %arg8[%c0_140, %c0_141], %322 {strides = array<i32>} : memref<8x128xf32, #tpu.memory_space<vmem>>, vector<8x128xf32>,
      %cst_142 = arith.constant 0.000000e+00 : f32
      %324 = vector.broadcast %cst_142 : f32 to vector<8x128xf32>
      %c0_143 = arith.constant 0 : index
      %c0_144 = arith.constant 0 : index
      %325 = vector.load %arg9[%c0_143, %c0_144] : memref<8x128xf32, #tpu.memory_space<vmem>>, vector<8x128xf32>
      tpu.vector_store %arg9[%c0_143, %c0_144], %324 {strides = array<i32>} : memref<8x128xf32, #tpu.memory_space<vmem>>, vector<8x128xf32>,
    } else {
    }
    %c0 = arith.constant 0 : index
    %c0_1 = arith.constant 0 : index
    %c0_2 = arith.constant 0 : index
    %3 = vector.load %arg2[%c0, %c0_1, %c0_2] : memref<8x8x32xbf16, #tpu.memory_space<vmem>>, vector<1x8x32xbf16>
    %4 = vector.shape_cast %3 : vector<1x8x32xbf16> to vector<8x32xbf16>
    %c0_3 = arith.constant 0 : index
    %c0_4 = arith.constant 0 : index
    %5 = vector.load %arg3[%c0_3, %c0_4] : memref<32x512xbf16, #tpu.memory_space<vmem>>, vector<32x512xbf16>
    %cst = arith.constant dense<0.000000e+00> : vector<8x512xf32>
    %6 = tpu.matmul %4, %5, %cst {dimension_numbers = #tpu.dot_dimension_numbers<[1], [0], [0], [1], [0, 0, 1, 1], [], []>} : vector<8x32xbf16>, vector<32x512xbf16>, vector<8x512xf32> -> vector<8x512xf32>
    %c0_5 = arith.constant 0 : index
    %c0_6 = arith.constant 0 : index
    %c0_7 = arith.constant 0 : index
    %7 = vector.load %arg10[%c0_5, %c0_6, %c0_7] : memref<8x8x512xf32, #tpu.memory_space<vmem>>, vector<1x8x512xf32>
    %8 = vector.shape_cast %7 : vector<1x8x512xf32> to vector<8x512xf32>
    %9 = vector.shape_cast %6 : vector<8x512xf32> to vector<1x8x512xf32>
    tpu.vector_store %arg10[%c0_5, %c0_6, %c0_7], %9 {strides = array<i32>} : memref<8x8x512xf32, #tpu.memory_space<vmem>>, vector<1x8x512xf32>,
    %c1 = arith.constant 1 : index
    %c0_8 = arith.constant 0 : index
    %c0_9 = arith.constant 0 : index
    %10 = vector.load %arg2[%c1, %c0_8, %c0_9] : memref<8x8x32xbf16, #tpu.memory_space<vmem>>, vector<1x8x32xbf16>
    %11 = vector.shape_cast %10 : vector<1x8x32xbf16> to vector<8x32xbf16>
    %c0_10 = arith.constant 0 : index
    %c0_11 = arith.constant 0 : index
    %12 = vector.load %arg3[%c0_10, %c0_11] : memref<32x512xbf16, #tpu.memory_space<vmem>>, vector<32x512xbf16>
    %cst_12 = arith.constant dense<0.000000e+00> : vector<8x512xf32>
    %13 = tpu.matmul %11, %12, %cst_12 {dimension_numbers = #tpu.dot_dimension_numbers<[1], [0], [0], [1], [0, 0, 1, 1], [], []>} : vector<8x32xbf16>, vector<32x512xbf16>, vector<8x512xf32> -> vector<8x512xf32>
    %c1_13 = arith.constant 1 : index
    %c0_14 = arith.constant 0 : index
    %c0_15 = arith.constant 0 : index
    %14 = vector.load %arg10[%c1_13, %c0_14, %c0_15] : memref<8x8x512xf32, #tpu.memory_space<vmem>>, vector<1x8x512xf32>
    %15 = vector.shape_cast %14 : vector<1x8x512xf32> to vector<8x512xf32>
    %16 = vector.shape_cast %13 : vector<8x512xf32> to vector<1x8x512xf32>
    tpu.vector_store %arg10[%c1_13, %c0_14, %c0_15], %16 {strides = array<i32>} : memref<8x8x512xf32, #tpu.memory_space<vmem>>, vector<1x8x512xf32>,
    %c2 = arith.constant 2 : index
    %c0_16 = arith.constant 0 : index
    %c0_17 = arith.constant 0 : index
    %17 = vector.load %arg2[%c2, %c0_16, %c0_17] : memref<8x8x32xbf16, #tpu.memory_space<vmem>>, vector<1x8x32xbf16>
    %18 = vector.shape_cast %17 : vector<1x8x32xbf16> to vector<8x32xbf16>
    %c0_18 = arith.constant 0 : index
    %c0_19 = arith.constant 0 : index
    %19 = vector.load %arg3[%c0_18, %c0_19] : memref<32x512xbf16, #tpu.memory_space<vmem>>, vector<32x512xbf16>
    %cst_20 = arith.constant dense<0.000000e+00> : vector<8x512xf32>
    %20 = tpu.matmul %18, %19, %cst_20 {dimension_numbers = #tpu.dot_dimension_numbers<[1], [0], [0], [1], [0, 0, 1, 1], [], []>} : vector<8x32xbf16>, vector<32x512xbf16>, vector<8x512xf32> -> vector<8x512xf32>
    %c2_21 = arith.constant 2 : index
    %c0_22 = arith.constant 0 : index
    %c0_23 = arith.constant 0 : index
    %21 = vector.load %arg10[%c2_21, %c0_22, %c0_23] : memref<8x8x512xf32, #tpu.memory_space<vmem>>, vector<1x8x512xf32>
    %22 = vector.shape_cast %21 : vector<1x8x512xf32> to vector<8x512xf32>
    %23 = vector.shape_cast %20 : vector<8x512xf32> to vector<1x8x512xf32>
    tpu.vector_store %arg10[%c2_21, %c0_22, %c0_23], %23 {strides = array<i32>} : memref<8x8x512xf32, #tpu.memory_space<vmem>>, vector<1x8x512xf32>,
    %c3 = arith.constant 3 : index
    %c0_24 = arith.constant 0 : index
    %c0_25 = arith.constant 0 : index
    %24 = vector.load %arg2[%c3, %c0_24, %c0_25] : memref<8x8x32xbf16, #tpu.memory_space<vmem>>, vector<1x8x32xbf16>
    %25 = vector.shape_cast %24 : vector<1x8x32xbf16> to vector<8x32xbf16>
    %c0_26 = arith.constant 0 : index
    %c0_27 = arith.constant 0 : index
    %26 = vector.load %arg3[%c0_26, %c0_27] : memref<32x512xbf16, #tpu.memory_space<vmem>>, vector<32x512xbf16>
    %cst_28 = arith.constant dense<0.000000e+00> : vector<8x512xf32>
    %27 = tpu.matmul %25, %26, %cst_28 {dimension_numbers = #tpu.dot_dimension_numbers<[1], [0], [0], [1], [0, 0, 1, 1], [], []>} : vector<8x32xbf16>, vector<32x512xbf16>, vector<8x512xf32> -> vector<8x512xf32>
    %c3_29 = arith.constant 3 : index
    %c0_30 = arith.constant 0 : index
    %c0_31 = arith.constant 0 : index
    %28 = vector.load %arg10[%c3_29, %c0_30, %c0_31] : memref<8x8x512xf32, #tpu.memory_space<vmem>>, vector<1x8x512xf32>
    %29 = vector.shape_cast %28 : vector<1x8x512xf32> to vector<8x512xf32>
    %30 = vector.shape_cast %27 : vector<8x512xf32> to vector<1x8x512xf32>
    tpu.vector_store %arg10[%c3_29, %c0_30, %c0_31], %30 {strides = array<i32>} : memref<8x8x512xf32, #tpu.memory_space<vmem>>, vector<1x8x512xf32>,
    %c4 = arith.constant 4 : index
    %c0_32 = arith.constant 0 : index
    %c0_33 = arith.constant 0 : index
    %31 = vector.load %arg2[%c4, %c0_32, %c0_33] : memref<8x8x32xbf16, #tpu.memory_space<vmem>>, vector<1x8x32xbf16>
    %32 = vector.shape_cast %31 : vector<1x8x32xbf16> to vector<8x32xbf16>
    %c0_34 = arith.constant 0 : index
    %c0_35 = arith.constant 0 : index
    %33 = vector.load %arg3[%c0_34, %c0_35] : memref<32x512xbf16, #tpu.memory_space<vmem>>, vector<32x512xbf16>
    %cst_36 = arith.constant dense<0.000000e+00> : vector<8x512xf32>
    %34 = tpu.matmul %32, %33, %cst_36 {dimension_numbers = #tpu.dot_dimension_numbers<[1], [0], [0], [1], [0, 0, 1, 1], [], []>} : vector<8x32xbf16>, vector<32x512xbf16>, vector<8x512xf32> -> vector<8x512xf32>
    %c4_37 = arith.constant 4 : index
    %c0_38 = arith.constant 0 : index
    %c0_39 = arith.constant 0 : index
    %35 = vector.load %arg10[%c4_37, %c0_38, %c0_39] : memref<8x8x512xf32, #tpu.memory_space<vmem>>, vector<1x8x512xf32>
    %36 = vector.shape_cast %35 : vector<1x8x512xf32> to vector<8x512xf32>
    %37 = vector.shape_cast %34 : vector<8x512xf32> to vector<1x8x512xf32>
    tpu.vector_store %arg10[%c4_37, %c0_38, %c0_39], %37 {strides = array<i32>} : memref<8x8x512xf32, #tpu.memory_space<vmem>>, vector<1x8x512xf32>,
    %c5 = arith.constant 5 : index
    %c0_40 = arith.constant 0 : index
    %c0_41 = arith.constant 0 : index
    %38 = vector.load %arg2[%c5, %c0_40, %c0_41] : memref<8x8x32xbf16, #tpu.memory_space<vmem>>, vector<1x8x32xbf16>
    %39 = vector.shape_cast %38 : vector<1x8x32xbf16> to vector<8x32xbf16>
    %c0_42 = arith.constant 0 : index
    %c0_43 = arith.constant 0 : index
    %40 = vector.load %arg3[%c0_42, %c0_43] : memref<32x512xbf16, #tpu.memory_space<vmem>>, vector<32x512xbf16>
    %cst_44 = arith.constant dense<0.000000e+00> : vector<8x512xf32>
    %41 = tpu.matmul %39, %40, %cst_44 {dimension_numbers = #tpu.dot_dimension_numbers<[1], [0], [0], [1], [0, 0, 1, 1], [], []>} : vector<8x32xbf16>, vector<32x512xbf16>, vector<8x512xf32> -> vector<8x512xf32>
    %c5_45 = arith.constant 5 : index
    %c0_46 = arith.constant 0 : index
    %c0_47 = arith.constant 0 : index
    %42 = vector.load %arg10[%c5_45, %c0_46, %c0_47] : memref<8x8x512xf32, #tpu.memory_space<vmem>>, vector<1x8x512xf32>
    %43 = vector.shape_cast %42 : vector<1x8x512xf32> to vector<8x512xf32>
    %44 = vector.shape_cast %41 : vector<8x512xf32> to vector<1x8x512xf32>
    tpu.vector_store %arg10[%c5_45, %c0_46, %c0_47], %44 {strides = array<i32>} : memref<8x8x512xf32, #tpu.memory_space<vmem>>, vector<1x8x512xf32>,
    %c6 = arith.constant 6 : index
    %c0_48 = arith.constant 0 : index
    %c0_49 = arith.constant 0 : index
    %45 = vector.load %arg2[%c6, %c0_48, %c0_49] : memref<8x8x32xbf16, #tpu.memory_space<vmem>>, vector<1x8x32xbf16>
    %46 = vector.shape_cast %45 : vector<1x8x32xbf16> to vector<8x32xbf16>
    %c0_50 = arith.constant 0 : index
    %c0_51 = arith.constant 0 : index
    %47 = vector.load %arg3[%c0_50, %c0_51] : memref<32x512xbf16, #tpu.memory_space<vmem>>, vector<32x512xbf16>
    %cst_52 = arith.constant dense<0.000000e+00> : vector<8x512xf32>
    %48 = tpu.matmul %46, %47, %cst_52 {dimension_numbers = #tpu.dot_dimension_numbers<[1], [0], [0], [1], [0, 0, 1, 1], [], []>} : vector<8x32xbf16>, vector<32x512xbf16>, vector<8x512xf32> -> vector<8x512xf32>
    %c6_53 = arith.constant 6 : index
    %c0_54 = arith.constant 0 : index
    %c0_55 = arith.constant 0 : index
    %49 = vector.load %arg10[%c6_53, %c0_54, %c0_55] : memref<8x8x512xf32, #tpu.memory_space<vmem>>, vector<1x8x512xf32>
    %50 = vector.shape_cast %49 : vector<1x8x512xf32> to vector<8x512xf32>
    %51 = vector.shape_cast %48 : vector<8x512xf32> to vector<1x8x512xf32>
    tpu.vector_store %arg10[%c6_53, %c0_54, %c0_55], %51 {strides = array<i32>} : memref<8x8x512xf32, #tpu.memory_space<vmem>>, vector<1x8x512xf32>,
    %c7 = arith.constant 7 : index
    %c0_56 = arith.constant 0 : index
    %c0_57 = arith.constant 0 : index
    %52 = vector.load %arg2[%c7, %c0_56, %c0_57] : memref<8x8x32xbf16, #tpu.memory_space<vmem>>, vector<1x8x32xbf16>
    %53 = vector.shape_cast %52 : vector<1x8x32xbf16> to vector<8x32xbf16>
    %c0_58 = arith.constant 0 : index
    %c0_59 = arith.constant 0 : index
    %54 = vector.load %arg3[%c0_58, %c0_59] : memref<32x512xbf16, #tpu.memory_space<vmem>>, vector<32x512xbf16>
    %cst_60 = arith.constant dense<0.000000e+00> : vector<8x512xf32>
    %55 = tpu.matmul %53, %54, %cst_60 {dimension_numbers = #tpu.dot_dimension_numbers<[1], [0], [0], [1], [0, 0, 1, 1], [], []>} : vector<8x32xbf16>, vector<32x512xbf16>, vector<8x512xf32> -> vector<8x512xf32>
    %c7_61 = arith.constant 7 : index
    %c0_62 = arith.constant 0 : index
    %c0_63 = arith.constant 0 : index
    %56 = vector.load %arg10[%c7_61, %c0_62, %c0_63] : memref<8x8x512xf32, #tpu.memory_space<vmem>>, vector<1x8x512xf32>
    %57 = vector.shape_cast %56 : vector<1x8x512xf32> to vector<8x512xf32>
    %58 = vector.shape_cast %55 : vector<8x512xf32> to vector<1x8x512xf32>
    tpu.vector_store %arg10[%c7_61, %c0_62, %c0_63], %58 {strides = array<i32>} : memref<8x8x512xf32, #tpu.memory_space<vmem>>, vector<1x8x512xf32>,
    %c0_64 = arith.constant 0 : index
    %c0_65 = arith.constant 0 : index
    %59 = vector.load %arg8[%c0_64, %c0_65] : memref<8x128xf32, #tpu.memory_space<vmem>>, vector<8x128xf32>
    %c0_66 = arith.constant 0 : index
    %c0_67 = arith.constant 0 : index
    %60 = vector.load %arg9[%c0_66, %c0_67] : memref<8x128xf32, #tpu.memory_space<vmem>>, vector<8x128xf32>
    %c0_i32_68 = arith.constant 0 : i32
    %61 = arith.index_cast %c0_i32_68 : i32 to index
    %c0_69 = arith.constant 0 : index
    %c0_70 = arith.constant 0 : index
    %62 = vector.load %arg10[%61, %c0_69, %c0_70] : memref<8x8x512xf32, #tpu.memory_space<vmem>>, vector<1x8x512xf32>
    %63 = vector.shape_cast %62 : vector<1x8x512xf32> to vector<8x512xf32>
    %64 = arith.truncf %59 : vector<8x128xf32> to vector<8x128xbf16>
    %c0_71 = arith.constant 0 : index
    %c0_72 = arith.constant 0 : index
    %65 = vector.load %arg4[%c0_71, %c0_72] : memref<128x512xbf16, #tpu.memory_space<vmem>>, vector<128x512xbf16>
    %cst_73 = arith.constant dense<0.000000e+00> : vector<8x512xf32>
    %66 = tpu.matmul %64, %65, %cst_73 {dimension_numbers = #tpu.dot_dimension_numbers<[1], [0], [0], [1], [0, 0, 1, 1], [], []>} : vector<8x128xbf16>, vector<128x512xbf16>, vector<8x512xf32> -> vector<8x512xf32>
    %67 = arith.addf %63, %66 : vector<8x512xf32>
    %68 = vector.extract_strided_slice %67 {offsets = [0, 0], sizes = [8, 128], strides = [1, 1]} : vector<8x512xf32> to vector<8x128xf32>
    %69 = arith.negf %68 : vector<8x128xf32>
    %70 = math.exp %69 : vector<8x128xf32>
    %cst_74 = arith.constant 1.000000e+00 : f32
    %71 = vector.broadcast %cst_74 : f32 to vector<8x128xf32>
    %72 = arith.addf %71, %70 : vector<8x128xf32>
    %73 = arith.divf %71, %72 : vector<8x128xf32>
    %74 = vector.extract_strided_slice %67 {offsets = [0, 128], sizes = [8, 128], strides = [1, 1]} : vector<8x512xf32> to vector<8x128xf32>
    %75 = arith.negf %74 : vector<8x128xf32>
    %76 = math.exp %75 : vector<8x128xf32>
    %cst_75 = arith.constant 1.000000e+00 : f32
    %77 = vector.broadcast %cst_75 : f32 to vector<8x128xf32>
    %78 = arith.addf %77, %76 : vector<8x128xf32>
    %79 = arith.divf %77, %78 : vector<8x128xf32>
    %80 = vector.extract_strided_slice %67 {offsets = [0, 256], sizes = [8, 128], strides = [1, 1]} : vector<8x512xf32> to vector<8x128xf32>
    %81 = math.tanh %80 : vector<8x128xf32>
    %82 = vector.extract_strided_slice %67 {offsets = [0, 384], sizes = [8, 128], strides = [1, 1]} : vector<8x512xf32> to vector<8x128xf32>
    %83 = arith.negf %82 : vector<8x128xf32>
    %84 = math.exp %83 : vector<8x128xf32>
    %cst_76 = arith.constant 1.000000e+00 : f32
    %85 = vector.broadcast %cst_76 : f32 to vector<8x128xf32>
    %86 = arith.addf %85, %84 : vector<8x128xf32>
    %87 = arith.divf %85, %86 : vector<8x128xf32>
    %88 = arith.mulf %79, %60 : vector<8x128xf32>
    %89 = arith.mulf %73, %81 : vector<8x128xf32>
    %90 = arith.addf %88, %89 : vector<8x128xf32>
    %91 = math.tanh %90 : vector<8x128xf32>
    %92 = arith.mulf %87, %91 : vector<8x128xf32>
    %c1_i32 = arith.constant 1 : i32
    %93 = arith.index_cast %c1_i32 : i32 to index
    %c0_77 = arith.constant 0 : index
    %c0_78 = arith.constant 0 : index
    %94 = vector.load %arg10[%93, %c0_77, %c0_78] : memref<8x8x512xf32, #tpu.memory_space<vmem>>, vector<1x8x512xf32>
    %95 = vector.shape_cast %94 : vector<1x8x512xf32> to vector<8x512xf32>
    %96 = arith.truncf %92 : vector<8x128xf32> to vector<8x128xbf16>
    %c0_79 = arith.constant 0 : index
    %c0_80 = arith.constant 0 : index
    %97 = vector.load %arg4[%c0_79, %c0_80] : memref<128x512xbf16, #tpu.memory_space<vmem>>, vector<128x512xbf16>
    %cst_81 = arith.constant dense<0.000000e+00> : vector<8x512xf32>
    %98 = tpu.matmul %96, %97, %cst_81 {dimension_numbers = #tpu.dot_dimension_numbers<[1], [0], [0], [1], [0, 0, 1, 1], [], []>} : vector<8x128xbf16>, vector<128x512xbf16>, vector<8x512xf32> -> vector<8x512xf32>
    %99 = arith.addf %95, %98 : vector<8x512xf32>
    %100 = vector.extract_strided_slice %99 {offsets = [0, 0], sizes = [8, 128], strides = [1, 1]} : vector<8x512xf32> to vector<8x128xf32>
    %101 = arith.negf %100 : vector<8x128xf32>
    %102 = math.exp %101 : vector<8x128xf32>
    %cst_82 = arith.constant 1.000000e+00 : f32
    %103 = vector.broadcast %cst_82 : f32 to vector<8x128xf32>
    %104 = arith.addf %103, %102 : vector<8x128xf32>
    %105 = arith.divf %103, %104 : vector<8x128xf32>
    %106 = vector.extract_strided_slice %99 {offsets = [0, 128], sizes = [8, 128], strides = [1, 1]} : vector<8x512xf32> to vector<8x128xf32>
    %107 = arith.negf %106 : vector<8x128xf32>
    %108 = math.exp %107 : vector<8x128xf32>
    %cst_83 = arith.constant 1.000000e+00 : f32
    %109 = vector.broadcast %cst_83 : f32 to vector<8x128xf32>
    %110 = arith.addf %109, %108 : vector<8x128xf32>
    %111 = arith.divf %109, %110 : vector<8x128xf32>
    %112 = vector.extract_strided_slice %99 {offsets = [0, 256], sizes = [8, 128], strides = [1, 1]} : vector<8x512xf32> to vector<8x128xf32>
    %113 = math.tanh %112 : vector<8x128xf32>
    %114 = vector.extract_strided_slice %99 {offsets = [0, 384], sizes = [8, 128], strides = [1, 1]} : vector<8x512xf32> to vector<8x128xf32>
    %115 = arith.negf %114 : vector<8x128xf32>
    %116 = math.exp %115 : vector<8x128xf32>
    %cst_84 = arith.constant 1.000000e+00 : f32
    %117 = vector.broadcast %cst_84 : f32 to vector<8x128xf32>
    %118 = arith.addf %117, %116 : vector<8x128xf32>
    %119 = arith.divf %117, %118 : vector<8x128xf32>
    %120 = arith.mulf %111, %90 : vector<8x128xf32>
    %121 = arith.mulf %105, %113 : vector<8x128xf32>
    %122 = arith.addf %120, %121 : vector<8x128xf32>
    %123 = math.tanh %122 : vector<8x128xf32>
    %124 = arith.mulf %119, %123 : vector<8x128xf32>
    %c2_i32 = arith.constant 2 : i32
    %125 = arith.index_cast %c2_i32 : i32 to index
    %c0_85 = arith.constant 0 : index
    %c0_86 = arith.constant 0 : index
    %126 = vector.load %arg10[%125, %c0_85, %c0_86] : memref<8x8x512xf32, #tpu.memory_space<vmem>>, vector<1x8x512xf32>
    %127 = vector.shape_cast %126 : vector<1x8x512xf32> to vector<8x512xf32>
    %128 = arith.truncf %124 : vector<8x128xf32> to vector<8x128xbf16>
    %c0_87 = arith.constant 0 : index
    %c0_88 = arith.constant 0 : index
    %129 = vector.load %arg4[%c0_87, %c0_88] : memref<128x512xbf16, #tpu.memory_space<vmem>>, vector<128x512xbf16>
    %cst_89 = arith.constant dense<0.000000e+00> : vector<8x512xf32>
    %130 = tpu.matmul %128, %129, %cst_89 {dimension_numbers = #tpu.dot_dimension_numbers<[1], [0], [0], [1], [0, 0, 1, 1], [], []>} : vector<8x128xbf16>, vector<128x512xbf16>, vector<8x512xf32> -> vector<8x512xf32>
    %131 = arith.addf %127, %130 : vector<8x512xf32>
    %132 = vector.extract_strided_slice %131 {offsets = [0, 0], sizes = [8, 128], strides = [1, 1]} : vector<8x512xf32> to vector<8x128xf32>
    %133 = arith.negf %132 : vector<8x128xf32>
    %134 = math.exp %133 : vector<8x128xf32>
    %cst_90 = arith.constant 1.000000e+00 : f32
    %135 = vector.broadcast %cst_90 : f32 to vector<8x128xf32>
    %136 = arith.addf %135, %134 : vector<8x128xf32>
    %137 = arith.divf %135, %136 : vector<8x128xf32>
    %138 = vector.extract_strided_slice %131 {offsets = [0, 128], sizes = [8, 128], strides = [1, 1]} : vector<8x512xf32> to vector<8x128xf32>
    %139 = arith.negf %138 : vector<8x128xf32>
    %140 = math.exp %139 : vector<8x128xf32>
    %cst_91 = arith.constant 1.000000e+00 : f32
    %141 = vector.broadcast %cst_91 : f32 to vector<8x128xf32>
    %142 = arith.addf %141, %140 : vector<8x128xf32>
    %143 = arith.divf %141, %142 : vector<8x128xf32>
    %144 = vector.extract_strided_slice %131 {offsets = [0, 256], sizes = [8, 128], strides = [1, 1]} : vector<8x512xf32> to vector<8x128xf32>
    %145 = math.tanh %144 : vector<8x128xf32>
    %146 = vector.extract_strided_slice %131 {offsets = [0, 384], sizes = [8, 128], strides = [1, 1]} : vector<8x512xf32> to vector<8x128xf32>
    %147 = arith.negf %146 : vector<8x128xf32>
    %148 = math.exp %147 : vector<8x128xf32>
    %cst_92 = arith.constant 1.000000e+00 : f32
    %149 = vector.broadcast %cst_92 : f32 to vector<8x128xf32>
    %150 = arith.addf %149, %148 : vector<8x128xf32>
    %151 = arith.divf %149, %150 : vector<8x128xf32>
    %152 = arith.mulf %143, %122 : vector<8x128xf32>
    %153 = arith.mulf %137, %145 : vector<8x128xf32>
    %154 = arith.addf %152, %153 : vector<8x128xf32>
    %155 = math.tanh %154 : vector<8x128xf32>
    %156 = arith.mulf %151, %155 : vector<8x128xf32>
    %c3_i32 = arith.constant 3 : i32
    %157 = arith.index_cast %c3_i32 : i32 to index
    %c0_93 = arith.constant 0 : index
    %c0_94 = arith.constant 0 : index
    %158 = vector.load %arg10[%157, %c0_93, %c0_94] : memref<8x8x512xf32, #tpu.memory_space<vmem>>, vector<1x8x512xf32>
    %159 = vector.shape_cast %158 : vector<1x8x512xf32> to vector<8x512xf32>
    %160 = arith.truncf %156 : vector<8x128xf32> to vector<8x128xbf16>
    %c0_95 = arith.constant 0 : index
    %c0_96 = arith.constant 0 : index
    %161 = vector.load %arg4[%c0_95, %c0_96] : memref<128x512xbf16, #tpu.memory_space<vmem>>, vector<128x512xbf16>
    %cst_97 = arith.constant dense<0.000000e+00> : vector<8x512xf32>
    %162 = tpu.matmul %160, %161, %cst_97 {dimension_numbers = #tpu.dot_dimension_numbers<[1], [0], [0], [1], [0, 0, 1, 1], [], []>} : vector<8x128xbf16>, vector<128x512xbf16>, vector<8x512xf32> -> vector<8x512xf32>
    %163 = arith.addf %159, %162 : vector<8x512xf32>
    %164 = vector.extract_strided_slice %163 {offsets = [0, 0], sizes = [8, 128], strides = [1, 1]} : vector<8x512xf32> to vector<8x128xf32>
    %165 = arith.negf %164 : vector<8x128xf32>
    %166 = math.exp %165 : vector<8x128xf32>
    %cst_98 = arith.constant 1.000000e+00 : f32
    %167 = vector.broadcast %cst_98 : f32 to vector<8x128xf32>
    %168 = arith.addf %167, %166 : vector<8x128xf32>
    %169 = arith.divf %167, %168 : vector<8x128xf32>
    %170 = vector.extract_strided_slice %163 {offsets = [0, 128], sizes = [8, 128], strides = [1, 1]} : vector<8x512xf32> to vector<8x128xf32>
    %171 = arith.negf %170 : vector<8x128xf32>
    %172 = math.exp %171 : vector<8x128xf32>
    %cst_99 = arith.constant 1.000000e+00 : f32
    %173 = vector.broadcast %cst_99 : f32 to vector<8x128xf32>
    %174 = arith.addf %173, %172 : vector<8x128xf32>
    %175 = arith.divf %173, %174 : vector<8x128xf32>
    %176 = vector.extract_strided_slice %163 {offsets = [0, 256], sizes = [8, 128], strides = [1, 1]} : vector<8x512xf32> to vector<8x128xf32>
    %177 = math.tanh %176 : vector<8x128xf32>
    %178 = vector.extract_strided_slice %163 {offsets = [0, 384], sizes = [8, 128], strides = [1, 1]} : vector<8x512xf32> to vector<8x128xf32>
    %179 = arith.negf %178 : vector<8x128xf32>
    %180 = math.exp %179 : vector<8x128xf32>
    %cst_100 = arith.constant 1.000000e+00 : f32
    %181 = vector.broadcast %cst_100 : f32 to vector<8x128xf32>
    %182 = arith.addf %181, %180 : vector<8x128xf32>
    %183 = arith.divf %181, %182 : vector<8x128xf32>
    %184 = arith.mulf %175, %154 : vector<8x128xf32>
    %185 = arith.mulf %169, %177 : vector<8x128xf32>
    %186 = arith.addf %184, %185 : vector<8x128xf32>
    %187 = math.tanh %186 : vector<8x128xf32>
    %188 = arith.mulf %183, %187 : vector<8x128xf32>
    %c4_i32 = arith.constant 4 : i32
    %189 = arith.index_cast %c4_i32 : i32 to index
    %c0_101 = arith.constant 0 : index
    %c0_102 = arith.constant 0 : index
    %190 = vector.load %arg10[%189, %c0_101, %c0_102] : memref<8x8x512xf32, #tpu.memory_space<vmem>>, vector<1x8x512xf32>
    %191 = vector.shape_cast %190 : vector<1x8x512xf32> to vector<8x512xf32>
    %192 = arith.truncf %188 : vector<8x128xf32> to vector<8x128xbf16>
    %c0_103 = arith.constant 0 : index
    %c0_104 = arith.constant 0 : index
    %193 = vector.load %arg4[%c0_103, %c0_104] : memref<128x512xbf16, #tpu.memory_space<vmem>>, vector<128x512xbf16>
    %cst_105 = arith.constant dense<0.000000e+00> : vector<8x512xf32>
    %194 = tpu.matmul %192, %193, %cst_105 {dimension_numbers = #tpu.dot_dimension_numbers<[1], [0], [0], [1], [0, 0, 1, 1], [], []>} : vector<8x128xbf16>, vector<128x512xbf16>, vector<8x512xf32> -> vector<8x512xf32>
    %195 = arith.addf %191, %194 : vector<8x512xf32>
    %196 = vector.extract_strided_slice %195 {offsets = [0, 0], sizes = [8, 128], strides = [1, 1]} : vector<8x512xf32> to vector<8x128xf32>
    %197 = arith.negf %196 : vector<8x128xf32>
    %198 = math.exp %197 : vector<8x128xf32>
    %cst_106 = arith.constant 1.000000e+00 : f32
    %199 = vector.broadcast %cst_106 : f32 to vector<8x128xf32>
    %200 = arith.addf %199, %198 : vector<8x128xf32>
    %201 = arith.divf %199, %200 : vector<8x128xf32>
    %202 = vector.extract_strided_slice %195 {offsets = [0, 128], sizes = [8, 128], strides = [1, 1]} : vector<8x512xf32> to vector<8x128xf32>
    %203 = arith.negf %202 : vector<8x128xf32>
    %204 = math.exp %203 : vector<8x128xf32>
    %cst_107 = arith.constant 1.000000e+00 : f32
    %205 = vector.broadcast %cst_107 : f32 to vector<8x128xf32>
    %206 = arith.addf %205, %204 : vector<8x128xf32>
    %207 = arith.divf %205, %206 : vector<8x128xf32>
    %208 = vector.extract_strided_slice %195 {offsets = [0, 256], sizes = [8, 128], strides = [1, 1]} : vector<8x512xf32> to vector<8x128xf32>
    %209 = math.tanh %208 : vector<8x128xf32>
    %210 = vector.extract_strided_slice %195 {offsets = [0, 384], sizes = [8, 128], strides = [1, 1]} : vector<8x512xf32> to vector<8x128xf32>
    %211 = arith.negf %210 : vector<8x128xf32>
    %212 = math.exp %211 : vector<8x128xf32>
    %cst_108 = arith.constant 1.000000e+00 : f32
    %213 = vector.broadcast %cst_108 : f32 to vector<8x128xf32>
    %214 = arith.addf %213, %212 : vector<8x128xf32>
    %215 = arith.divf %213, %214 : vector<8x128xf32>
    %216 = arith.mulf %207, %186 : vector<8x128xf32>
    %217 = arith.mulf %201, %209 : vector<8x128xf32>
    %218 = arith.addf %216, %217 : vector<8x128xf32>
    %219 = math.tanh %218 : vector<8x128xf32>
    %220 = arith.mulf %215, %219 : vector<8x128xf32>
    %c5_i32 = arith.constant 5 : i32
    %221 = arith.index_cast %c5_i32 : i32 to index
    %c0_109 = arith.constant 0 : index
    %c0_110 = arith.constant 0 : index
    %222 = vector.load %arg10[%221, %c0_109, %c0_110] : memref<8x8x512xf32, #tpu.memory_space<vmem>>, vector<1x8x512xf32>
    %223 = vector.shape_cast %222 : vector<1x8x512xf32> to vector<8x512xf32>
    %224 = arith.truncf %220 : vector<8x128xf32> to vector<8x128xbf16>
    %c0_111 = arith.constant 0 : index
    %c0_112 = arith.constant 0 : index
    %225 = vector.load %arg4[%c0_111, %c0_112] : memref<128x512xbf16, #tpu.memory_space<vmem>>, vector<128x512xbf16>
    %cst_113 = arith.constant dense<0.000000e+00> : vector<8x512xf32>
    %226 = tpu.matmul %224, %225, %cst_113 {dimension_numbers = #tpu.dot_dimension_numbers<[1], [0], [0], [1], [0, 0, 1, 1], [], []>} : vector<8x128xbf16>, vector<128x512xbf16>, vector<8x512xf32> -> vector<8x512xf32>
    %227 = arith.addf %223, %226 : vector<8x512xf32>
    %228 = vector.extract_strided_slice %227 {offsets = [0, 0], sizes = [8, 128], strides = [1, 1]} : vector<8x512xf32> to vector<8x128xf32>
    %229 = arith.negf %228 : vector<8x128xf32>
    %230 = math.exp %229 : vector<8x128xf32>
    %cst_114 = arith.constant 1.000000e+00 : f32
    %231 = vector.broadcast %cst_114 : f32 to vector<8x128xf32>
    %232 = arith.addf %231, %230 : vector<8x128xf32>
    %233 = arith.divf %231, %232 : vector<8x128xf32>
    %234 = vector.extract_strided_slice %227 {offsets = [0, 128], sizes = [8, 128], strides = [1, 1]} : vector<8x512xf32> to vector<8x128xf32>
    %235 = arith.negf %234 : vector<8x128xf32>
    %236 = math.exp %235 : vector<8x128xf32>
    %cst_115 = arith.constant 1.000000e+00 : f32
    %237 = vector.broadcast %cst_115 : f32 to vector<8x128xf32>
    %238 = arith.addf %237, %236 : vector<8x128xf32>
    %239 = arith.divf %237, %238 : vector<8x128xf32>
    %240 = vector.extract_strided_slice %227 {offsets = [0, 256], sizes = [8, 128], strides = [1, 1]} : vector<8x512xf32> to vector<8x128xf32>
    %241 = math.tanh %240 : vector<8x128xf32>
    %242 = vector.extract_strided_slice %227 {offsets = [0, 384], sizes = [8, 128], strides = [1, 1]} : vector<8x512xf32> to vector<8x128xf32>
    %243 = arith.negf %242 : vector<8x128xf32>
    %244 = math.exp %243 : vector<8x128xf32>
    %cst_116 = arith.constant 1.000000e+00 : f32
    %245 = vector.broadcast %cst_116 : f32 to vector<8x128xf32>
    %246 = arith.addf %245, %244 : vector<8x128xf32>
    %247 = arith.divf %245, %246 : vector<8x128xf32>
    %248 = arith.mulf %239, %218 : vector<8x128xf32>
    %249 = arith.mulf %233, %241 : vector<8x128xf32>
    %250 = arith.addf %248, %249 : vector<8x128xf32>
    %251 = math.tanh %250 : vector<8x128xf32>
    %252 = arith.mulf %247, %251 : vector<8x128xf32>
    %c6_i32 = arith.constant 6 : i32
    %253 = arith.index_cast %c6_i32 : i32 to index
    %c0_117 = arith.constant 0 : index
    %c0_118 = arith.constant 0 : index
    %254 = vector.load %arg10[%253, %c0_117, %c0_118] : memref<8x8x512xf32, #tpu.memory_space<vmem>>, vector<1x8x512xf32>
    %255 = vector.shape_cast %254 : vector<1x8x512xf32> to vector<8x512xf32>
    %256 = arith.truncf %252 : vector<8x128xf32> to vector<8x128xbf16>
    %c0_119 = arith.constant 0 : index
    %c0_120 = arith.constant 0 : index
    %257 = vector.load %arg4[%c0_119, %c0_120] : memref<128x512xbf16, #tpu.memory_space<vmem>>, vector<128x512xbf16>
    %cst_121 = arith.constant dense<0.000000e+00> : vector<8x512xf32>
    %258 = tpu.matmul %256, %257, %cst_121 {dimension_numbers = #tpu.dot_dimension_numbers<[1], [0], [0], [1], [0, 0, 1, 1], [], []>} : vector<8x128xbf16>, vector<128x512xbf16>, vector<8x512xf32> -> vector<8x512xf32>
    %259 = arith.addf %255, %258 : vector<8x512xf32>
    %260 = vector.extract_strided_slice %259 {offsets = [0, 0], sizes = [8, 128], strides = [1, 1]} : vector<8x512xf32> to vector<8x128xf32>
    %261 = arith.negf %260 : vector<8x128xf32>
    %262 = math.exp %261 : vector<8x128xf32>
    %cst_122 = arith.constant 1.000000e+00 : f32
    %263 = vector.broadcast %cst_122 : f32 to vector<8x128xf32>
    %264 = arith.addf %263, %262 : vector<8x128xf32>
    %265 = arith.divf %263, %264 : vector<8x128xf32>
    %266 = vector.extract_strided_slice %259 {offsets = [0, 128], sizes = [8, 128], strides = [1, 1]} : vector<8x512xf32> to vector<8x128xf32>
    %267 = arith.negf %266 : vector<8x128xf32>
    %268 = math.exp %267 : vector<8x128xf32>
    %cst_123 = arith.constant 1.000000e+00 : f32
    %269 = vector.broadcast %cst_123 : f32 to vector<8x128xf32>
    %270 = arith.addf %269, %268 : vector<8x128xf32>
    %271 = arith.divf %269, %270 : vector<8x128xf32>
    %272 = vector.extract_strided_slice %259 {offsets = [0, 256], sizes = [8, 128], strides = [1, 1]} : vector<8x512xf32> to vector<8x128xf32>
    %273 = math.tanh %272 : vector<8x128xf32>
    %274 = vector.extract_strided_slice %259 {offsets = [0, 384], sizes = [8, 128], strides = [1, 1]} : vector<8x512xf32> to vector<8x128xf32>
    %275 = arith.negf %274 : vector<8x128xf32>
    %276 = math.exp %275 : vector<8x128xf32>
    %cst_124 = arith.constant 1.000000e+00 : f32
    %277 = vector.broadcast %cst_124 : f32 to vector<8x128xf32>
    %278 = arith.addf %277, %276 : vector<8x128xf32>
    %279 = arith.divf %277, %278 : vector<8x128xf32>
    %280 = arith.mulf %271, %250 : vector<8x128xf32>
    %281 = arith.mulf %265, %273 : vector<8x128xf32>
    %282 = arith.addf %280, %281 : vector<8x128xf32>
    %283 = math.tanh %282 : vector<8x128xf32>
    %284 = arith.mulf %279, %283 : vector<8x128xf32>
    %c7_i32 = arith.constant 7 : i32
    %285 = arith.index_cast %c7_i32 : i32 to index
    %c0_125 = arith.constant 0 : index
    %c0_126 = arith.constant 0 : index
    %286 = vector.load %arg10[%285, %c0_125, %c0_126] : memref<8x8x512xf32, #tpu.memory_space<vmem>>, vector<1x8x512xf32>
    %287 = vector.shape_cast %286 : vector<1x8x512xf32> to vector<8x512xf32>
    %288 = arith.truncf %284 : vector<8x128xf32> to vector<8x128xbf16>
    %c0_127 = arith.constant 0 : index
    %c0_128 = arith.constant 0 : index
    %289 = vector.load %arg4[%c0_127, %c0_128] : memref<128x512xbf16, #tpu.memory_space<vmem>>, vector<128x512xbf16>
    %cst_129 = arith.constant dense<0.000000e+00> : vector<8x512xf32>
    %290 = tpu.matmul %288, %289, %cst_129 {dimension_numbers = #tpu.dot_dimension_numbers<[1], [0], [0], [1], [0, 0, 1, 1], [], []>} : vector<8x128xbf16>, vector<128x512xbf16>, vector<8x512xf32> -> vector<8x512xf32>
    %291 = arith.addf %287, %290 : vector<8x512xf32>
    %292 = vector.extract_strided_slice %291 {offsets = [0, 0], sizes = [8, 128], strides = [1, 1]} : vector<8x512xf32> to vector<8x128xf32>
    %293 = arith.negf %292 : vector<8x128xf32>
    %294 = math.exp %293 : vector<8x128xf32>
    %cst_130 = arith.constant 1.000000e+00 : f32
    %295 = vector.broadcast %cst_130 : f32 to vector<8x128xf32>
    %296 = arith.addf %295, %294 : vector<8x128xf32>
    %297 = arith.divf %295, %296 : vector<8x128xf32>
    %298 = vector.extract_strided_slice %291 {offsets = [0, 128], sizes = [8, 128], strides = [1, 1]} : vector<8x512xf32> to vector<8x128xf32>
    %299 = arith.negf %298 : vector<8x128xf32>
    %300 = math.exp %299 : vector<8x128xf32>
    %cst_131 = arith.constant 1.000000e+00 : f32
    %301 = vector.broadcast %cst_131 : f32 to vector<8x128xf32>
    %302 = arith.addf %301, %300 : vector<8x128xf32>
    %303 = arith.divf %301, %302 : vector<8x128xf32>
    %304 = vector.extract_strided_slice %291 {offsets = [0, 256], sizes = [8, 128], strides = [1, 1]} : vector<8x512xf32> to vector<8x128xf32>
    %305 = math.tanh %304 : vector<8x128xf32>
    %306 = vector.extract_strided_slice %291 {offsets = [0, 384], sizes = [8, 128], strides = [1, 1]} : vector<8x512xf32> to vector<8x128xf32>
    %307 = arith.negf %306 : vector<8x128xf32>
    %308 = math.exp %307 : vector<8x128xf32>
    %cst_132 = arith.constant 1.000000e+00 : f32
    %309 = vector.broadcast %cst_132 : f32 to vector<8x128xf32>
    %310 = arith.addf %309, %308 : vector<8x128xf32>
    %311 = arith.divf %309, %310 : vector<8x128xf32>
    %312 = arith.mulf %303, %282 : vector<8x128xf32>
    %313 = arith.mulf %297, %305 : vector<8x128xf32>
    %314 = arith.addf %312, %313 : vector<8x128xf32>
    %315 = math.tanh %314 : vector<8x128xf32>
    %316 = arith.mulf %311, %315 : vector<8x128xf32>
    %c8_i32 = arith.constant 8 : i32
    %c0_133 = arith.constant 0 : index
    %c0_134 = arith.constant 0 : index
    %317 = vector.load %arg8[%c0_133, %c0_134] : memref<8x128xf32, #tpu.memory_space<vmem>>, vector<8x128xf32>
    tpu.vector_store %arg8[%c0_133, %c0_134], %316 {strides = array<i32>} : memref<8x128xf32, #tpu.memory_space<vmem>>, vector<8x128xf32>,
    %c0_135 = arith.constant 0 : index
    %c0_136 = arith.constant 0 : index
    %318 = vector.load %arg9[%c0_135, %c0_136] : memref<8x128xf32, #tpu.memory_space<vmem>>, vector<8x128xf32>
    tpu.vector_store %arg9[%c0_135, %c0_136], %314 {strides = array<i32>} : memref<8x128xf32, #tpu.memory_space<vmem>>, vector<8x128xf32>,
    %c0_i32_137 = arith.constant 0 : i32
    %319 = arith.cmpi eq, %arg1, %c0_i32_137 : i32
    %320 = arith.extui %319 : i1 to i32
    %c0_i32_138 = arith.constant 0 : i32
    %321 = arith.cmpi ne, %320, %c0_i32_138 : i32
    scf.if %321 {
      %322 = arith.truncf %316 : vector<8x128xf32> to vector<8x128xbf16>
      %c0_139 = arith.constant 0 : index
      %c0_140 = arith.constant 0 : index
      %323 = vector.load %arg5[%c0_139, %c0_140] : memref<128x128xbf16, #tpu.memory_space<vmem>>, vector<128x128xbf16>
      %cst_141 = arith.constant dense<0.000000e+00> : vector<8x128xf32>
      %324 = tpu.matmul %322, %323, %cst_141 {dimension_numbers = #tpu.dot_dimension_numbers<[1], [0], [0], [1], [0, 0, 1, 1], [], []>} : vector<8x128xbf16>, vector<128x128xbf16>, vector<8x128xf32> -> vector<8x128xf32>
      %c0_142 = arith.constant 0 : index
      %c0_143 = arith.constant 0 : index
      %325 = vector.load %arg6[%c0_142, %c0_143] : memref<1x128xf32, #tpu.memory_space<vmem>>, vector<1x128xf32>
      %326 = vector.broadcast %325 : vector<1x128xf32> to vector<8x128xf32>
      %327 = arith.addf %324, %326 : vector<8x128xf32>
      %cst_144 = arith.constant dense<0xFF800000> : vector<8xf32>
      %328 = vector.multi_reduction <maximumf>, %327, %cst_144 [1] : vector<8x128xf32> to vector<8xf32>
      %329 = vector.shape_cast %328 : vector<8xf32> to vector<8x1xf32>
      %330 = vector.broadcast %329 : vector<8x1xf32> to vector<8x128xf32>
      %331 = arith.subf %327, %330 : vector<8x128xf32>
      %332 = math.exp %331 : vector<8x128xf32>
      %cst_145 = arith.constant dense<0.000000e+00> : vector<8xf32>
      %333 = vector.multi_reduction <add>, %332, %cst_145 [1] : vector<8x128xf32> to vector<8xf32>
      %334 = vector.shape_cast %333 : vector<8xf32> to vector<8x1xf32>
      %335 = math.log %334 : vector<8x1xf32>
      %336 = arith.addf %335, %329 : vector<8x1xf32>
      %337 = vector.broadcast %336 : vector<8x1xf32> to vector<8x128xf32>
      %338 = arith.subf %327, %337 : vector<8x128xf32>
      %c0_146 = arith.constant 0 : index
      %c0_147 = arith.constant 0 : index
      %339 = vector.load %arg7[%c0_146, %c0_147] : memref<8x128xf32, #tpu.memory_space<vmem>>, vector<8x128xf32>
      tpu.vector_store %arg7[%c0_146, %c0_147], %338 {strides = array<i32>} : memref<8x128xf32, #tpu.memory_space<vmem>>, vector<8x128xf32>,
    } else {
    }
    return
  }
  func.func @transform_0(%arg0: i32, %arg1: i32) -> (i32, i32, i32) {
    %c0_i32 = arith.constant 0 : i32
    %c0_i32_0 = arith.constant 0 : i32
    return %arg1, %arg0, %c0_i32 : i32, i32, i32
  }
  func.func @transform_1(%arg0: i32, %arg1: i32) -> (i32, i32) {
    %c0_i32 = arith.constant 0 : i32
    %c0_i32_0 = arith.constant 0 : i32
    %c0_i32_1 = arith.constant 0 : i32
    return %c0_i32, %c0_i32_0 : i32, i32
  }
  func.func @transform_2(%arg0: i32, %arg1: i32) -> (i32, i32) {
    %c0_i32 = arith.constant 0 : i32
    %c0_i32_0 = arith.constant 0 : i32
    %c0_i32_1 = arith.constant 0 : i32
    return %c0_i32, %c0_i32_0 : i32, i32
  }
  func.func @transform_3(%arg0: i32, %arg1: i32) -> (i32, i32) {
    %c0_i32 = arith.constant 0 : i32
    %c0_i32_0 = arith.constant 0 : i32
    %c0_i32_1 = arith.constant 0 : i32
    return %c0_i32, %c0_i32_0 : i32, i32
  }
  func.func @transform_4(%arg0: i32, %arg1: i32) -> (i32, i32) {
    %c0_i32 = arith.constant 0 : i32
    %c0_i32_0 = arith.constant 0 : i32
    %c0_i32_1 = arith.constant 0 : i32
    return %c0_i32, %c0_i32_0 : i32, i32
  }
  func.func @transform_5(%arg0: i32, %arg1: i32) -> (i32, i32) {
    %c0_i32 = arith.constant 0 : i32
    %c0_i32_0 = arith.constant 0 : i32
    return %arg0, %c0_i32 : i32, i32
  }
}

</mosaic_0001>

<llo_original>
// kernel: tpu_custom_call.1
$region0: #{tpu_custom_call.1}
  #allocation0 [shape = 'u32[]', space=smem, size = 0x4, offset = 0x4, fixed_abs, tag = 'smem constant byte address 0x4 - core index']
  #allocation1 [shape = 'u32[72,128]{1,0:T(1,128)}', space=vmem, size = 0x9000, scoped, tag = 'internal scratch']
  #allocation2 [shape = 'f32[8,128]{1,0:T(8,128)}', space=vmem, size = 0x1000, scoped, tag = 'scratch operand']
  #allocation3 [shape = 'f32[8,128]{1,0:T(8,128)}', space=vmem, size = 0x1000, scoped, tag = 'scratch operand']
  #allocation4 [shape = 'f32[8,8,512]{2,1,0:T(8,128)}', space=vmem, size = 0x20000, scoped, tag = 'scratch operand']
  %s0 = inlined_call_operand.hbm [shape: bf16[8,8,32], index: 0, kind: input, shape index: {}]
  %s1 = inlined_call_operand.hbm [shape: bf16[32,512], index: 1, kind: input, shape index: {}]
  %s2 = inlined_call_operand.hbm [shape: bf16[128,512], index: 2, kind: input, shape index: {}]
  %s3 = inlined_call_operand.hbm [shape: bf16[128,128], index: 3, kind: input, shape index: {}]
  %s4 = inlined_call_operand.vmem [shape: f32[1,128], index: 4, kind: input, shape index: {}]
  %s5 = inlined_call_operand.hbm [shape: f32[8,128], index: 5, kind: output, shape index: {}]
  %s6 = sld [smem:[#allocation0]]
  $region54: #{tpu_custom_call.1} parent=0
    _
  %s8 = ssub.s32 1, %s6
  %s9 = scalar_select 0, %s8, %s6
  $region1: #{tpu_custom_call.1} parent=0
    #allocation5 [shape = 'u8[16384]{0}', space=vmem, size = 0x4000, scoped, tag = 'input window, operand 0, single buffered']
    #allocation6 [shape = 's32[1]{0}', space=sflag, size = 0x4, scoped, tag = 'scoped memory for tpu_custom_call.1']
    #allocation7 [shape = 's32[1]{0}', space=sflag, size = 0x4, scoped, tag = 'scoped memory for tpu_custom_call.1']
    #allocation8 [shape = 'u8[32768]{0}', space=vmem, size = 0x8000, scoped, tag = 'input window, operand 1, single buffered']
    #allocation9 [shape = 's32[1]{0}', space=sflag, size = 0x4, scoped, tag = 'scoped memory for tpu_custom_call.1']
    #allocation10 [shape = 'u8[131072]{0}', space=vmem, size = 0x20000, scoped, tag = 'input window, operand 2, single buffered']
    #allocation11 [shape = 'u8[32768]{0}', space=vmem, size = 0x8000, scoped, tag = 'input window, operand 3, single buffered']
    #allocation12 [shape = 's32[1]{0}', space=sflag, size = 0x4, scoped, tag = 'scoped memory for tpu_custom_call.1']
    #allocation13 [shape = 'u8[4096]{0}', space=vmem, size = 0x1000, scoped, tag = 'output window, operand 0, single buffered']
    %10 = vsyncpa [#allocation6], 0
    %11 = vsyncpa [#allocation9], 0
    %12 = vsyncpa [#allocation12], 0
    %13 = vsyncpa [#allocation7], 0
    // Predicated region
    $region2: #{tpu_custom_call.1} parent=1 // pred_check
      _
    $region3: #{tpu_custom_call.1} parent=1 // pred_check_branch
      %15 = sbr.rel (0) target = $region5
    $region4: #{tpu_custom_call.1} parent=1 // pred_region
      %17 = vsyncadd [#allocation6], 0
      %s18 = sshll.u32 %s0, 4
      %s19 = int_to_ptr.hbm [resolvable:$true] %s18
      %s20 = sshll.u32 [#allocation5], 4
      %s21 = int_to_ptr.vmem [resolvable:$true] %s20
      %26 = dma.hbm_to_vmem [thread:$0]  %s19, 512, %s21, [#allocation6], 64, 64, 4
    $region5: #{tpu_custom_call.1} parent=1 // pred_fallthru
      _
    // Predicated region
    $region6: #{tpu_custom_call.1} parent=1 // pred_check
      _
    $region7: #{tpu_custom_call.1} parent=1 // pred_check_branch
      %28 = sbr.rel (0) target = $region9
    $region8: #{tpu_custom_call.1} parent=1 // pred_region
      %30 = vsyncadd [#allocation9], 0
      %s31 = sshll.u32 %s1, 4
      %s32 = int_to_ptr.hbm [resolvable:$true] %s31
      %s33 = sshll.u32 [#allocation8], 4
      %s34 = int_to_ptr.vmem [resolvable:$true] %s33
      %39 = dma.hbm_to_vmem [thread:$0]  %s32, 1024, %s34, [#allocation9], 256, 256, 16
    $region9: #{tpu_custom_call.1} parent=1 // pred_fallthru
      _
    // Predicated region
    $region10: #{tpu_custom_call.1} parent=1 // pred_check
      _
    $region11: #{tpu_custom_call.1} parent=1 // pred_check_branch
      %41 = sbr.rel (0) target = $region13
    $region12: #{tpu_custom_call.1} parent=1 // pred_region
      %43 = vsyncadd [#allocation9], 0
      %s44 = sshll.u32 %s2, 4
      %s45 = int_to_ptr.hbm [resolvable:$true] %s44
      %s46 = sshll.u32 [#allocation10], 4
      %s47 = int_to_ptr.vmem [resolvable:$true] %s46
      %52 = dma.hbm_to_vmem [thread:$0]  %s45, 4096, %s47, [#allocation9], 256, 256, 16
    $region13: #{tpu_custom_call.1} parent=1 // pred_fallthru
      _
    // Predicated region
    $region14: #{tpu_custom_call.1} parent=1 // pred_check
      _
    $region15: #{tpu_custom_call.1} parent=1 // pred_check_branch
      %54 = sbr.rel (0) target = $region17
    $region16: #{tpu_custom_call.1} parent=1 // pred_region
      %56 = vsyncadd [#allocation12], 0
      %s57 = sshll.u32 %s3, 4
      %s58 = int_to_ptr.hbm [resolvable:$true] %s57
      %s59 = sshll.u32 [#allocation11], 4
      %s60 = int_to_ptr.vmem [resolvable:$true] %s59
      %65 = dma.hbm_to_vmem [thread:$0]  %s58, 1024, %s60, [#allocation12], 64, 64, 4
    $region17: #{tpu_custom_call.1} parent=1 // pred_fallthru
      _
    // Predicated region
    $region18: #{tpu_custom_call.1} parent=1 // pred_check
      _
    $region19: #{tpu_custom_call.1} parent=1 // pred_check_branch
      %67 = sbr.rel (0) target = $region21
    $region20: #{tpu_custom_call.1} parent=1 // pred_region
      _
    $region21: #{tpu_custom_call.1} parent=1 // pred_fallthru
      _
    // Predicated region
    $region22: #{tpu_custom_call.1} parent=1 // pred_check
      _
    $region23: #{tpu_custom_call.1} parent=1 // pred_check_branch
      %69 = sbr.rel (0) target = $region25
    $region24: #{tpu_custom_call.1} parent=1 // pred_region
      %71 = dma.done [#allocation6], 512
    $region25: #{tpu_custom_call.1} parent=1 // pred_fallthru
      _
    // Predicated region
    $region26: #{tpu_custom_call.1} parent=1 // pred_check
      _
    $region27: #{tpu_custom_call.1} parent=1 // pred_check_branch
      %73 = sbr.rel (0) target = $region29
    $region28: #{tpu_custom_call.1} parent=1 // pred_region
      %75 = dma.done [#allocation9], 1024
    $region29: #{tpu_custom_call.1} parent=1 // pred_fallthru
      _
    // Predicated region
    $region30: #{tpu_custom_call.1} parent=1 // pred_check
      _
    $region31: #{tpu_custom_call.1} parent=1 // pred_check_branch
      %77 = sbr.rel (0) target = $region33
    $region32: #{tpu_custom_call.1} parent=1 // pred_region
      %79 = dma.done [#allocation9], 4096
    $region33: #{tpu_custom_call.1} parent=1 // pred_fallthru
      _
    // Predicated region
    $region34: #{tpu_custom_call.1} parent=1 // pred_check
      _
    $region35: #{tpu_custom_call.1} parent=1 // pred_check_branch
      %81 = sbr.rel (0) target = $region37
    $region36: #{tpu_custom_call.1} parent=1 // pred_region
      %83 = dma.done [#allocation12], 1024
    $region37: #{tpu_custom_call.1} parent=1 // pred_fallthru
      _
    %p85 = scmp.eq.s32.totalorder 0, 0
    // Predicated region
    $region38: #{tpu_custom_call.1} parent=1 // pred_check
      %p86 = pneg %p85
    $region39: #{tpu_custom_call.1} parent=1 // pred_check_branch
      %88 = sbr.rel (%p86) target = $region41
    $region40: #{tpu_custom_call.1} parent=1 // pred_region
      %89 = vst [vmem:[#allocation2] sm:$0xff] 0.0
      %90 = vst [vmem:[#allocation3] sm:$0xff] 0.0
    $region41: #{tpu_custom_call.1} parent=1 // pred_fallthru
      _
    %v91 = vld [vmem:[#allocation5] sm:$0xf]
    %v92 = vld [vmem:[#allocation8] sm:$0xff]
    %v93 = vld [vmem:[#allocation8 + $0x8] sm:$0xff]
    %v94 = vld [vmem:[#allocation8 + $0x10] sm:$0xff]
    %v95 = vld [vmem:[#allocation8 + $0x18] sm:$0xff]
    %v96 = vld [vmem:[#allocation8 + $0x20] sm:$0xff]
    %v97 = vld [vmem:[#allocation8 + $0x28] sm:$0xff]
    %v98 = vld [vmem:[#allocation8 + $0x30] sm:$0xff]
    %v99 = vld [vmem:[#allocation8 + $0x38] sm:$0xff]
    %v108 = vunpack.c.l.b16 %v92
    %v109 = vunpack.c.h.b16 %v92
    %v110 = vunpack.c.l.b16 %v93
    %v111 = vunpack.c.h.b16 %v93
    %v112 = vunpack.c.l.b16 %v94
    %v113 = vunpack.c.h.b16 %v94
    %v114 = vunpack.c.l.b16 %v95
    %v115 = vunpack.c.h.b16 %v95
    %v116 = vunpack.c.l.b16 %v96
    %v117 = vunpack.c.h.b16 %v96
    %v118 = vunpack.c.l.b16 %v97
    %v119 = vunpack.c.h.b16 %v97
    %v120 = vunpack.c.l.b16 %v98
    %v121 = vunpack.c.h.b16 %v98
    %v122 = vunpack.c.l.b16 %v99
    %v123 = vunpack.c.h.b16 %v99
    %v124 = vpack.c.b16 %v112, %v108
    %v125 = vpack.c.b16 %v113, %v109
    %v126 = vpack.c.b16 %v114, %v110
    %v127 = vpack.c.b16 %v115, %v111
    %v128 = vpack.c.b16 %v120, %v116
    %v129 = vpack.c.b16 %v121, %v117
    %v130 = vpack.c.b16 %v122, %v118
    %v131 = vpack.c.b16 %v123, %v119
    %vm140 = vcmask 261120
    %v142 = vsel %vm140, %v91, 0
    %144 = vmatpush.bf16.msra.mxu0 0
    %145 = vmatpush.bf16.msra.mxu0 0
    %146 = vmatpush.bf16.msra.mxu0 0
    %147 = vmatpush.bf16.msra.mxu0 0
    %148 = vmatpush.bf16.msra.mxu0 0
    %149 = vmatpush.bf16.msra.mxu0 0
    %150 = vmatpush.bf16.msra.mxu0 %v128
    %151 = vmatpush.bf16.msra.mxu0 %v124
    %152 = vmatmul.bf16.gmra.mxu0 %v142
    %v153 = vpop.f32.mrf.mxu0
    %v154 = vadd.f32 0.0, %v153
    %v155 = vpop.f32.mrf.mxu0
    %156 = vdwg.mxu0
    %157 = vmatpush.bf16.msra.mxu0 0
    %158 = vmatpush.bf16.msra.mxu0 0
    %159 = vmatpush.bf16.msra.mxu0 0
    %160 = vmatpush.bf16.msra.mxu0 0
    %161 = vmatpush.bf16.msra.mxu0 0
    %162 = vmatpush.bf16.msra.mxu0 0
    %163 = vmatpush.bf16.msra.mxu0 %v129
    %164 = vmatpush.bf16.msra.mxu0 %v125
    %165 = vmatmul.bf16.gmra.mxu0 %v142
    %v166 = vpop.f32.mrf.mxu0
    %v167 = vadd.f32 0.0, %v166
    %v168 = vpop.f32.mrf.mxu0
    %169 = vdwg.mxu0
    %170 = vmatpush.bf16.msra.mxu0 0
    %171 = vmatpush.bf16.msra.mxu0 0
    %172 = vmatpush.bf16.msra.mxu0 0
    %173 = vmatpush.bf16.msra.mxu0 0
    %174 = vmatpush.bf16.msra.mxu0 0
    %175 = vmatpush.bf16.msra.mxu0 0
    %176 = vmatpush.bf16.msra.mxu0 %v130
    %177 = vmatpush.bf16.msra.mxu0 %v126
    %178 = vmatmul.bf16.gmra.mxu0 %v142
    %v179 = vpop.f32.mrf.mxu0
    %v180 = vadd.f32 0.0, %v179
    %v181 = vpop.f32.mrf.mxu0
    %182 = vdwg.mxu0
    %183 = vmatpush.bf16.msra.mxu0 0
    %184 = vmatpush.bf16.msra.mxu0 0
    %185 = vmatpush.bf16.msra.mxu0 0
    %186 = vmatpush.bf16.msra.mxu0 0
    %187 = vmatpush.bf16.msra.mxu0 0
    %188 = vmatpush.bf16.msra.mxu0 0
    %189 = vmatpush.bf16.msra.mxu0 %v131
    %190 = vmatpush.bf16.msra.mxu0 %v127
    %191 = vmatmul.bf16.gmra.mxu0 %v142
    %v192 = vpop.f32.mrf.mxu0
    %v193 = vadd.f32 0.0, %v192
    %v194 = vpop.f32.mrf.mxu0
    %195 = vdwg.mxu0
    %196 = vst [vmem:[#allocation4] sm:$0xff] %v154
    %197 = vst [vmem:[#allocation4 + $0x8] sm:$0xff] %v167
    %198 = vst [vmem:[#allocation4 + $0x10] sm:$0xff] %v180
    %199 = vst [vmem:[#allocation4 + $0x18] sm:$0xff] %v193
    %s200 = scalar_lea.vmem [#allocation5], 4
    %v201 = vld [vmem:[%s200] sm:$0xf]
    %v202 = vld [vmem:[#allocation8] sm:$0xff]
    %v203 = vld [vmem:[#allocation8 + $0x8] sm:$0xff]
    %v204 = vld [vmem:[#allocation8 + $0x10] sm:$0xff]
    %v205 = vld [vmem:[#allocation8 + $0x18] sm:$0xff]
    %v206 = vld [vmem:[#allocation8 + $0x20] sm:$0xff]
    %v207 = vld [vmem:[#allocation8 + $0x28] sm:$0xff]
    %v208 = vld [vmem:[#allocation8 + $0x30] sm:$0xff]
    %v209 = vld [vmem:[#allocation8 + $0x38] sm:$0xff]
    %v218 = vunpack.c.l.b16 %v202
    %v219 = vunpack.c.h.b16 %v202
    %v220 = vunpack.c.l.b16 %v203
    %v221 = vunpack.c.h.b16 %v203
    %v222 = vunpack.c.l.b16 %v204
    %v223 = vunpack.c.h.b16 %v204
    %v224 = vunpack.c.l.b16 %v205
    %v225 = vunpack.c.h.b16 %v205
    %v226 = vunpack.c.l.b16 %v206
    %v227 = vunpack.c.h.b16 %v206
    %v228 = vunpack.c.l.b16 %v207
    %v229 = vunpack.c.h.b16 %v207
    %v230 = vunpack.c.l.b16 %v208
    %v231 = vunpack.c.h.b16 %v208
    %v232 = vunpack.c.l.b16 %v209
    %v233 = vunpack.c.h.b16 %v209
    %v234 = vpack.c.b16 %v222, %v218
    %v235 = vpack.c.b16 %v223, %v219
    %v236 = vpack.c.b16 %v224, %v220
    %v237 = vpack.c.b16 %v225, %v221
    %v238 = vpack.c.b16 %v230, %v226
    %v239 = vpack.c.b16 %v231, %v227
    %v240 = vpack.c.b16 %v232, %v228
    %v241 = vpack.c.b16 %v233, %v229
    %v251 = vsel %vm140, %v201, 0
    %253 = vmatpush.bf16.msra.mxu0 0
    %254 = vmatpush.bf16.msra.mxu0 0
    %255 = vmatpush.bf16.msra.mxu0 0
    %256 = vmatpush.bf16.msra.mxu0 0
    %257 = vmatpush.bf16.msra.mxu0 0
    %258 = vmatpush.bf16.msra.mxu0 0
    %259 = vmatpush.bf16.msra.mxu0 %v238
    %260 = vmatpush.bf16.msra.mxu0 %v234
    %261 = vmatmul.bf16.gmra.mxu0 %v251
    %v262 = vpop.f32.mrf.mxu0
    %v263 = vadd.f32 0.0, %v262
    %v264 = vpop.f32.mrf.mxu0
    %265 = vdwg.mxu0
    %266 = vmatpush.bf16.msra.mxu0 0
    %267 = vmatpush.bf16.msra.mxu0 0
    %268 = vmatpush.bf16.msra.mxu0 0
    %269 = vmatpush.bf16.msra.mxu0 0
    %270 = vmatpush.bf16.msra.mxu0 0
    %271 = vmatpush.bf16.msra.mxu0 0
    %272 = vmatpush.bf16.msra.mxu0 %v239
    %273 = vmatpush.bf16.msra.mxu0 %v235
    %274 = vmatmul.bf16.gmra.mxu0 %v251
    %v275 = vpop.f32.mrf.mxu0
    %v276 = vadd.f32 0.0, %v275
    %v277 = vpop.f32.mrf.mxu0
    %278 = vdwg.mxu0
    %279 = vmatpush.bf16.msra.mxu0 0
    %280 = vmatpush.bf16.msra.mxu0 0
    %281 = vmatpush.bf16.msra.mxu0 0
    %282 = vmatpush.bf16.msra.mxu0 0
    %283 = vmatpush.bf16.msra.mxu0 0
    %284 = vmatpush.bf16.msra.mxu0 0
    %285 = vmatpush.bf16.msra.mxu0 %v240
    %286 = vmatpush.bf16.msra.mxu0 %v236
    %287 = vmatmul.bf16.gmra.mxu0 %v251
    %v288 = vpop.f32.mrf.mxu0
    %v289 = vadd.f32 0.0, %v288
    %v290 = vpop.f32.mrf.mxu0
    %291 = vdwg.mxu0
    %292 = vmatpush.bf16.msra.mxu0 0
    %293 = vmatpush.bf16.msra.mxu0 0
    %294 = vmatpush.bf16.msra.mxu0 0
    %295 = vmatpush.bf16.msra.mxu0 0
    %296 = vmatpush.bf16.msra.mxu0 0
    %297 = vmatpush.bf16.msra.mxu0 0
    %298 = vmatpush.bf16.msra.mxu0 %v241
    %299 = vmatpush.bf16.msra.mxu0 %v237
    %300 = vmatmul.bf16.gmra.mxu0 %v251
    %v301 = vpop.f32.mrf.mxu0
    %v302 = vadd.f32 0.0, %v301
    %v303 = vpop.f32.mrf.mxu0
    %304 = vdwg.mxu0
    %s305 = scalar_lea.vmem [#allocation4], 32
    %306 = vst [vmem:[%s305] sm:$0xff] %v263
    %307 = vst [vmem:[%s305 + $0x8] sm:$0xff] %v276
    %308 = vst [vmem:[%s305 + $0x10] sm:$0xff] %v289
    %309 = vst [vmem:[%s305 + $0x18] sm:$0xff] %v302
    %s310 = scalar_lea.vmem [#allocation5], 8
    %v311 = vld [vmem:[%s310] sm:$0xf]
    %v312 = vld [vmem:[#allocation8] sm:$0xff]
    %v313 = vld [vmem:[#allocation8 + $0x8] sm:$0xff]
    %v314 = vld [vmem:[#allocation8 + $0x10] sm:$0xff]
    %v315 = vld [vmem:[#allocation8 + $0x18] sm:$0xff]
    %v316 = vld [vmem:[#allocation8 + $0x20] sm:$0xff]
    %v317 = vld [vmem:[#allocation8 + $0x28] sm:$0xff]
    %v318 = vld [vmem:[#allocation8 + $0x30] sm:$0xff]
    %v319 = vld [vmem:[#allocation8 + $0x38] sm:$0xff]
    %v328 = vunpack.c.l.b16 %v312
    %v329 = vunpack.c.h.b16 %v312
    %v330 = vunpack.c.l.b16 %v313
    %v331 = vunpack.c.h.b16 %v313
    %v332 = vunpack.c.l.b16 %v314
    %v333 = vunpack.c.h.b16 %v314
    %v334 = vunpack.c.l.b16 %v315
    %v335 = vunpack.c.h.b16 %v315
    %v336 = vunpack.c.l.b16 %v316
    %v337 = vunpack.c.h.b16 %v316
    %v338 = vunpack.c.l.b16 %v317
    %v339 = vunpack.c.h.b16 %v317
    %v340 = vunpack.c.l.b16 %v318
    %v341 = vunpack.c.h.b16 %v318
    %v342 = vunpack.c.l.b16 %v319
    %v343 = vunpack.c.h.b16 %v319
    %v344 = vpack.c.b16 %v332, %v328
    %v345 = vpack.c.b16 %v333, %v329
    %v346 = vpack.c.b16 %v334, %v330
    %v347 = vpack.c.b16 %v335, %v331
    %v348 = vpack.c.b16 %v340, %v336
    %v349 = vpack.c.b16 %v341, %v337
    %v350 = vpack.c.b16 %v342, %v338
    %v351 = vpack.c.b16 %v343, %v339
    %v361 = vsel %vm140, %v311, 0
    %363 = vmatpush.bf16.msra.mxu0 0
    %364 = vmatpush.bf16.msra.mxu0 0
    %365 = vmatpush.bf16.msra.mxu0 0
    %366 = vmatpush.bf16.msra.mxu0 0
    %367 = vmatpush.bf16.msra.mxu0 0
    %368 = vmatpush.bf16.msra.mxu0 0
    %369 = vmatpush.bf16.msra.mxu0 %v348
    %370 = vmatpush.bf16.msra.mxu0 %v344
    %371 = vmatmul.bf16.gmra.mxu0 %v361
    %v372 = vpop.f32.mrf.mxu0
    %v373 = vadd.f32 0.0, %v372
    %v374 = vpop.f32.mrf.mxu0
    %375 = vdwg.mxu0
    %376 = vmatpush.bf16.msra.mxu0 0
    %377 = vmatpush.bf16.msra.mxu0 0
    %378 = vmatpush.bf16.msra.mxu0 0
    %379 = vmatpush.bf16.msra.mxu0 0
    %380 = vmatpush.bf16.msra.mxu0 0
    %381 = vmatpush.bf16.msra.mxu0 0
    %382 = vmatpush.bf16.msra.mxu0 %v349
    %383 = vmatpush.bf16.msra.mxu0 %v345
    %384 = vmatmul.bf16.gmra.mxu0 %v361
    %v385 = vpop.f32.mrf.mxu0
    %v386 = vadd.f32 0.0, %v385
    %v387 = vpop.f32.mrf.mxu0
    %388 = vdwg.mxu0
    %389 = vmatpush.bf16.msra.mxu0 0
    %390 = vmatpush.bf16.msra.mxu0 0
    %391 = vmatpush.bf16.msra.mxu0 0
    %392 = vmatpush.bf16.msra.mxu0 0
    %393 = vmatpush.bf16.msra.mxu0 0
    %394 = vmatpush.bf16.msra.mxu0 0
    %395 = vmatpush.bf16.msra.mxu0 %v350
    %396 = vmatpush.bf16.msra.mxu0 %v346
    %397 = vmatmul.bf16.gmra.mxu0 %v361
    %v398 = vpop.f32.mrf.mxu0
    %v399 = vadd.f32 0.0, %v398
    %v400 = vpop.f32.mrf.mxu0
    %401 = vdwg.mxu0
    %402 = vmatpush.bf16.msra.mxu0 0
    %403 = vmatpush.bf16.msra.mxu0 0
    %404 = vmatpush.bf16.msra.mxu0 0
    %405 = vmatpush.bf16.msra.mxu0 0
    %406 = vmatpush.bf16.msra.mxu0 0
    %407 = vmatpush.bf16.msra.mxu0 0
    %408 = vmatpush.bf16.msra.mxu0 %v351
    %409 = vmatpush.bf16.msra.mxu0 %v347
    %410 = vmatmul.bf16.gmra.mxu0 %v361
    %v411 = vpop.f32.mrf.mxu0
    %v412 = vadd.f32 0.0, %v411
    %v413 = vpop.f32.mrf.mxu0
    %414 = vdwg.mxu0
    %s415 = scalar_lea.vmem [#allocation4], 64
    %416 = vst [vmem:[%s415] sm:$0xff] %v373
    %417 = vst [vmem:[%s415 + $0x8] sm:$0xff] %v386
    %418 = vst [vmem:[%s415 + $0x10] sm:$0xff] %v399
    %419 = vst [vmem:[%s415 + $0x18] sm:$0xff] %v412
    %s420 = scalar_lea.vmem [#allocation5], 12
    %v421 = vld [vmem:[%s420] sm:$0xf]
    %v422 = vld [vmem:[#allocation8] sm:$0xff]
    %v423 = vld [vmem:[#allocation8 + $0x8] sm:$0xff]
    %v424 = vld [vmem:[#allocation8 + $0x10] sm:$0xff]
    %v425 = vld [vmem:[#allocation8 + $0x18] sm:$0xff]
    %v426 = vld [vmem:[#allocation8 + $0x20] sm:$0xff]
    %v427 = vld [vmem:[#allocation8 + $0x28] sm:$0xff]
    %v428 = vld [vmem:[#allocation8 + $0x30] sm:$0xff]
    %v429 = vld [vmem:[#allocation8 + $0x38] sm:$0xff]
    %v438 = vunpack.c.l.b16 %v422
    %v439 = vunpack.c.h.b16 %v422
    %v440 = vunpack.c.l.b16 %v423
    %v441 = vunpack.c.h.b16 %v423
    %v442 = vunpack.c.l.b16 %v424
    %v443 = vunpack.c.h.b16 %v424
    %v444 = vunpack.c.l.b16 %v425
    %v445 = vunpack.c.h.b16 %v425
    %v446 = vunpack.c.l.b16 %v426
    %v447 = vunpack.c.h.b16 %v426
    %v448 = vunpack.c.l.b16 %v427
    %v449 = vunpack.c.h.b16 %v427
    %v450 = vunpack.c.l.b16 %v428
    %v451 = vunpack.c.h.b16 %v428
    %v452 = vunpack.c.l.b16 %v429
    %v453 = vunpack.c.h.b16 %v429
    %v454 = vpack.c.b16 %v442, %v438
    %v455 = vpack.c.b16 %v443, %v439
    %v456 = vpack.c.b16 %v444, %v440
    %v457 = vpack.c.b16 %v445, %v441
    %v458 = vpack.c.b16 %v450, %v446
    %v459 = vpack.c.b16 %v451, %v447
    %v460 = vpack.c.b16 %v452, %v448
    %v461 = vpack.c.b16 %v453, %v449
    %v471 = vsel %vm140, %v421, 0
    %473 = vmatpush.bf16.msra.mxu0 0
    %474 = vmatpush.bf16.msra.mxu0 0
    %475 = vmatpush.bf16.msra.mxu0 0
    %476 = vmatpush.bf16.msra.mxu0 0
    %477 = vmatpush.bf16.msra.mxu0 0
    %478 = vmatpush.bf16.msra.mxu0 0
    %479 = vmatpush.bf16.msra.mxu0 %v458
    %480 = vmatpush.bf16.msra.mxu0 %v454
    %481 = vmatmul.bf16.gmra.mxu0 %v471
    %v482 = vpop.f32.mrf.mxu0
    %v483 = vadd.f32 0.0, %v482
    %v484 = vpop.f32.mrf.mxu0
    %485 = vdwg.mxu0
    %486 = vmatpush.bf16.msra.mxu0 0
    %487 = vmatpush.bf16.msra.mxu0 0
    %488 = vmatpush.bf16.msra.mxu0 0
    %489 = vmatpush.bf16.msra.mxu0 0
    %490 = vmatpush.bf16.msra.mxu0 0
    %491 = vmatpush.bf16.msra.mxu0 0
    %492 = vmatpush.bf16.msra.mxu0 %v459
    %493 = vmatpush.bf16.msra.mxu0 %v455
    %494 = vmatmul.bf16.gmra.mxu0 %v471
    %v495 = vpop.f32.mrf.mxu0
    %v496 = vadd.f32 0.0, %v495
    %v497 = vpop.f32.mrf.mxu0
    %498 = vdwg.mxu0
    %499 = vmatpush.bf16.msra.mxu0 0
    %500 = vmatpush.bf16.msra.mxu0 0
    %501 = vmatpush.bf16.msra.mxu0 0
    %502 = vmatpush.bf16.msra.mxu0 0
    %503 = vmatpush.bf16.msra.mxu0 0
    %504 = vmatpush.bf16.msra.mxu0 0
    %505 = vmatpush.bf16.msra.mxu0 %v460
    %506 = vmatpush.bf16.msra.mxu0 %v456
    %507 = vmatmul.bf16.gmra.mxu0 %v471
    %v508 = vpop.f32.mrf.mxu0
    %v509 = vadd.f32 0.0, %v508
    %v510 = vpop.f32.mrf.mxu0
    %511 = vdwg.mxu0
    %512 = vmatpush.bf16.msra.mxu0 0
    %513 = vmatpush.bf16.msra.mxu0 0
    %514 = vmatpush.bf16.msra.mxu0 0
    %515 = vmatpush.bf16.msra.mxu0 0
    %516 = vmatpush.bf16.msra.mxu0 0
    %517 = vmatpush.bf16.msra.mxu0 0
    %518 = vmatpush.bf16.msra.mxu0 %v461
    %519 = vmatpush.bf16.msra.mxu0 %v457
    %520 = vmatmul.bf16.gmra.mxu0 %v471
    %v521 = vpop.f32.mrf.mxu0
    %v522 = vadd.f32 0.0, %v521
    %v523 = vpop.f32.mrf.mxu0
    %524 = vdwg.mxu0
    %s525 = scalar_lea.vmem [#allocation4], 96
    %526 = vst [vmem:[%s525] sm:$0xff] %v483
    %527 = vst [vmem:[%s525 + $0x8] sm:$0xff] %v496
    %528 = vst [vmem:[%s525 + $0x10] sm:$0xff] %v509
    %529 = vst [vmem:[%s525 + $0x18] sm:$0xff] %v522
    %s530 = scalar_lea.vmem [#allocation5], 16
    %v531 = vld [vmem:[%s530] sm:$0xf]
    %v532 = vld [vmem:[#allocation8] sm:$0xff]
    %v533 = vld [vmem:[#allocation8 + $0x8] sm:$0xff]
    %v534 = vld [vmem:[#allocation8 + $0x10] sm:$0xff]
    %v535 = vld [vmem:[#allocation8 + $0x18] sm:$0xff]
    %v536 = vld [vmem:[#allocation8 + $0x20] sm:$0xff]
    %v537 = vld [vmem:[#allocation8 + $0x28] sm:$0xff]
    %v538 = vld [vmem:[#allocation8 + $0x30] sm:$0xff]
    %v539 = vld [vmem:[#allocation8 + $0x38] sm:$0xff]
    %v548 = vunpack.c.l.b16 %v532
    %v549 = vunpack.c.h.b16 %v532
    %v550 = vunpack.c.l.b16 %v533
    %v551 = vunpack.c.h.b16 %v533
    %v552 = vunpack.c.l.b16 %v534
    %v553 = vunpack.c.h.b16 %v534
    %v554 = vunpack.c.l.b16 %v535
    %v555 = vunpack.c.h.b16 %v535
    %v556 = vunpack.c.l.b16 %v536
    %v557 = vunpack.c.h.b16 %v536
    %v558 = vunpack.c.l.b16 %v537
    %v559 = vunpack.c.h.b16 %v537
    %v560 = vunpack.c.l.b16 %v538
    %v561 = vunpack.c.h.b16 %v538
    %v562 = vunpack.c.l.b16 %v539
    %v563 = vunpack.c.h.b16 %v539
    %v564 = vpack.c.b16 %v552, %v548
    %v565 = vpack.c.b16 %v553, %v549
    %v566 = vpack.c.b16 %v554, %v550
    %v567 = vpack.c.b16 %v555, %v551
    %v568 = vpack.c.b16 %v560, %v556
    %v569 = vpack.c.b16 %v561, %v557
    %v570 = vpack.c.b16 %v562, %v558
    %v571 = vpack.c.b16 %v563, %v559
    %v581 = vsel %vm140, %v531, 0
    %583 = vmatpush.bf16.msra.mxu0 0
    %584 = vmatpush.bf16.msra.mxu0 0
    %585 = vmatpush.bf16.msra.mxu0 0
    %586 = vmatpush.bf16.msra.mxu0 0
    %587 = vmatpush.bf16.msra.mxu0 0
    %588 = vmatpush.bf16.msra.mxu0 0
    %589 = vmatpush.bf16.msra.mxu0 %v568
    %590 = vmatpush.bf16.msra.mxu0 %v564
    %591 = vmatmul.bf16.gmra.mxu0 %v581
    %v592 = vpop.f32.mrf.mxu0
    %v593 = vadd.f32 0.0, %v592
    %v594 = vpop.f32.mrf.mxu0
    %595 = vdwg.mxu0
    %596 = vmatpush.bf16.msra.mxu0 0
    %597 = vmatpush.bf16.msra.mxu0 0
    %598 = vmatpush.bf16.msra.mxu0 0
    %599 = vmatpush.bf16.msra.mxu0 0
    %600 = vmatpush.bf16.msra.mxu0 0
    %601 = vmatpush.bf16.msra.mxu0 0
    %602 = vmatpush.bf16.msra.mxu0 %v569
    %603 = vmatpush.bf16.msra.mxu0 %v565
    %604 = vmatmul.bf16.gmra.mxu0 %v581
    %v605 = vpop.f32.mrf.mxu0
    %v606 = vadd.f32 0.0, %v605
    %v607 = vpop.f32.mrf.mxu0
    %608 = vdwg.mxu0
    %609 = vmatpush.bf16.msra.mxu0 0
    %610 = vmatpush.bf16.msra.mxu0 0
    %611 = vmatpush.bf16.msra.mxu0 0
    %612 = vmatpush.bf16.msra.mxu0 0
    %613 = vmatpush.bf16.msra.mxu0 0
    %614 = vmatpush.bf16.msra.mxu0 0
    %615 = vmatpush.bf16.msra.mxu0 %v570
    %616 = vmatpush.bf16.msra.mxu0 %v566
    %617 = vmatmul.bf16.gmra.mxu0 %v581
    %v618 = vpop.f32.mrf.mxu0
    %v619 = vadd.f32 0.0, %v618
    %v620 = vpop.f32.mrf.mxu0
    %621 = vdwg.mxu0
    %622 = vmatpush.bf16.msra.mxu0 0
    %623 = vmatpush.bf16.msra.mxu0 0
    %624 = vmatpush.bf16.msra.mxu0 0
    %625 = vmatpush.bf16.msra.mxu0 0
    %626 = vmatpush.bf16.msra.mxu0 0
    %627 = vmatpush.bf16.msra.mxu0 0
    %628 = vmatpush.bf16.msra.mxu0 %v571
    %629 = vmatpush.bf16.msra.mxu0 %v567
    %630 = vmatmul.bf16.gmra.mxu0 %v581
    %v631 = vpop.f32.mrf.mxu0
    %v632 = vadd.f32 0.0, %v631
    %v633 = vpop.f32.mrf.mxu0
    %634 = vdwg.mxu0
    %s635 = scalar_lea.vmem [#allocation4], 128
    %636 = vst [vmem:[%s635] sm:$0xff] %v593
    %637 = vst [vmem:[%s635 + $0x8] sm:$0xff] %v606
    %638 = vst [vmem:[%s635 + $0x10] sm:$0xff] %v619
    %639 = vst [vmem:[%s635 + $0x18] sm:$0xff] %v632
    %s640 = scalar_lea.vmem [#allocation5], 20
    %v641 = vld [vmem:[%s640] sm:$0xf]
    %v642 = vld [vmem:[#allocation8] sm:$0xff]
    %v643 = vld [vmem:[#allocation8 + $0x8] sm:$0xff]
    %v644 = vld [vmem:[#allocation8 + $0x10] sm:$0xff]
    %v645 = vld [vmem:[#allocation8 + $0x18] sm:$0xff]
    %v646 = vld [vmem:[#allocation8 + $0x20] sm:$0xff]
    %v647 = vld [vmem:[#allocation8 + $0x28] sm:$0xff]
    %v648 = vld [vmem:[#allocation8 + $0x30] sm:$0xff]
    %v649 = vld [vmem:[#allocation8 + $0x38] sm:$0xff]
    %v658 = vunpack.c.l.b16 %v642
    %v659 = vunpack.c.h.b16 %v642
    %v660 = vunpack.c.l.b16 %v643
    %v661 = vunpack.c.h.b16 %v643
    %v662 = vunpack.c.l.b16 %v644
    %v663 = vunpack.c.h.b16 %v644
    %v664 = vunpack.c.l.b16 %v645
    %v665 = vunpack.c.h.b16 %v645
    %v666 = vunpack.c.l.b16 %v646
    %v667 = vunpack.c.h.b16 %v646
    %v668 = vunpack.c.l.b16 %v647
    %v669 = vunpack.c.h.b16 %v647
    %v670 = vunpack.c.l.b16 %v648
    %v671 = vunpack.c.h.b16 %v648
    %v672 = vunpack.c.l.b16 %v649
    %v673 = vunpack.c.h.b16 %v649
    %v674 = vpack.c.b16 %v662, %v658
    %v675 = vpack.c.b16 %v663, %v659
    %v676 = vpack.c.b16 %v664, %v660
    %v677 = vpack.c.b16 %v665, %v661
    %v678 = vpack.c.b16 %v670, %v666
    %v679 = vpack.c.b16 %v671, %v667
    %v680 = vpack.c.b16 %v672, %v668
    %v681 = vpack.c.b16 %v673, %v669
    %v691 = vsel %vm140, %v641, 0
    %693 = vmatpush.bf16.msra.mxu0 0
    %694 = vmatpush.bf16.msra.mxu0 0
    %695 = vmatpush.bf16.msra.mxu0 0
    %696 = vmatpush.bf16.msra.mxu0 0
    %697 = vmatpush.bf16.msra.mxu0 0
    %698 = vmatpush.bf16.msra.mxu0 0
    %699 = vmatpush.bf16.msra.mxu0 %v678
    %700 = vmatpush.bf16.msra.mxu0 %v674
    %701 = vmatmul.bf16.gmra.mxu0 %v691
    %v702 = vpop.f32.mrf.mxu0
    %v703 = vadd.f32 0.0, %v702
    %v704 = vpop.f32.mrf.mxu0
    %705 = vdwg.mxu0
    %706 = vmatpush.bf16.msra.mxu0 0
    %707 = vmatpush.bf16.msra.mxu0 0
    %708 = vmatpush.bf16.msra.mxu0 0
    %709 = vmatpush.bf16.msra.mxu0 0
    %710 = vmatpush.bf16.msra.mxu0 0
    %711 = vmatpush.bf16.msra.mxu0 0
    %712 = vmatpush.bf16.msra.mxu0 %v679
    %713 = vmatpush.bf16.msra.mxu0 %v675
    %714 = vmatmul.bf16.gmra.mxu0 %v691
    %v715 = vpop.f32.mrf.mxu0
    %v716 = vadd.f32 0.0, %v715
    %v717 = vpop.f32.mrf.mxu0
    %718 = vdwg.mxu0
    %719 = vmatpush.bf16.msra.mxu0 0
    %720 = vmatpush.bf16.msra.mxu0 0
    %721 = vmatpush.bf16.msra.mxu0 0
    %722 = vmatpush.bf16.msra.mxu0 0
    %723 = vmatpush.bf16.msra.mxu0 0
    %724 = vmatpush.bf16.msra.mxu0 0
    %725 = vmatpush.bf16.msra.mxu0 %v680
    %726 = vmatpush.bf16.msra.mxu0 %v676
    %727 = vmatmul.bf16.gmra.mxu0 %v691
    %v728 = vpop.f32.mrf.mxu0
    %v729 = vadd.f32 0.0, %v728
    %v730 = vpop.f32.mrf.mxu0
    %731 = vdwg.mxu0
    %732 = vmatpush.bf16.msra.mxu0 0
    %733 = vmatpush.bf16.msra.mxu0 0
    %734 = vmatpush.bf16.msra.mxu0 0
    %735 = vmatpush.bf16.msra.mxu0 0
    %736 = vmatpush.bf16.msra.mxu0 0
    %737 = vmatpush.bf16.msra.mxu0 0
    %738 = vmatpush.bf16.msra.mxu0 %v681
    %739 = vmatpush.bf16.msra.mxu0 %v677
    %740 = vmatmul.bf16.gmra.mxu0 %v691
    %v741 = vpop.f32.mrf.mxu0
    %v742 = vadd.f32 0.0, %v741
    %v743 = vpop.f32.mrf.mxu0
    %744 = vdwg.mxu0
    %s745 = scalar_lea.vmem [#allocation4], 160
    %746 = vst [vmem:[%s745] sm:$0xff] %v703
    %747 = vst [vmem:[%s745 + $0x8] sm:$0xff] %v716
    %748 = vst [vmem:[%s745 + $0x10] sm:$0xff] %v729
    %749 = vst [vmem:[%s745 + $0x18] sm:$0xff] %v742
    %s750 = scalar_lea.vmem [#allocation5], 24
    %v751 = vld [vmem:[%s750] sm:$0xf]
    %v752 = vld [vmem:[#allocation8] sm:$0xff]
    %v753 = vld [vmem:[#allocation8 + $0x8] sm:$0xff]
    %v754 = vld [vmem:[#allocation8 + $0x10] sm:$0xff]
    %v755 = vld [vmem:[#allocation8 + $0x18] sm:$0xff]
    %v756 = vld [vmem:[#allocation8 + $0x20] sm:$0xff]
    %v757 = vld [vmem:[#allocation8 + $0x28] sm:$0xff]
    %v758 = vld [vmem:[#allocation8 + $0x30] sm:$0xff]
    %v759 = vld [vmem:[#allocation8 + $0x38] sm:$0xff]
    %v768 = vunpack.c.l.b16 %v752
    %v769 = vunpack.c.h.b16 %v752
    %v770 = vunpack.c.l.b16 %v753
    %v771 = vunpack.c.h.b16 %v753
    %v772 = vunpack.c.l.b16 %v754
    %v773 = vunpack.c.h.b16 %v754
    %v774 = vunpack.c.l.b16 %v755
    %v775 = vunpack.c.h.b16 %v755
    %v776 = vunpack.c.l.b16 %v756
    %v777 = vunpack.c.h.b16 %v756
    %v778 = vunpack.c.l.b16 %v757
    %v779 = vunpack.c.h.b16 %v757
    %v780 = vunpack.c.l.b16 %v758
    %v781 = vunpack.c.h.b16 %v758
    %v782 = vunpack.c.l.b16 %v759
    %v783 = vunpack.c.h.b16 %v759
    %v784 = vpack.c.b16 %v772, %v768
    %v785 = vpack.c.b16 %v773, %v769
    %v786 = vpack.c.b16 %v774, %v770
    %v787 = vpack.c.b16 %v775, %v771
    %v788 = vpack.c.b16 %v780, %v776
    %v789 = vpack.c.b16 %v781, %v777
    %v790 = vpack.c.b16 %v782, %v778
    %v791 = vpack.c.b16 %v783, %v779
    %v801 = vsel %vm140, %v751, 0
    %803 = vmatpush.bf16.msra.mxu0 0
    %804 = vmatpush.bf16.msra.mxu0 0
    %805 = vmatpush.bf16.msra.mxu0 0
    %806 = vmatpush.bf16.msra.mxu0 0
    %807 = vmatpush.bf16.msra.mxu0 0
    %808 = vmatpush.bf16.msra.mxu0 0
    %809 = vmatpush.bf16.msra.mxu0 %v788
    %810 = vmatpush.bf16.msra.mxu0 %v784
    %811 = vmatmul.bf16.gmra.mxu0 %v801
    %v812 = vpop.f32.mrf.mxu0
    %v813 = vadd.f32 0.0, %v812
    %v814 = vpop.f32.mrf.mxu0
    %815 = vdwg.mxu0
    %816 = vmatpush.bf16.msra.mxu0 0
    %817 = vmatpush.bf16.msra.mxu0 0
    %818 = vmatpush.bf16.msra.mxu0 0
    %819 = vmatpush.bf16.msra.mxu0 0
    %820 = vmatpush.bf16.msra.mxu0 0
    %821 = vmatpush.bf16.msra.mxu0 0
    %822 = vmatpush.bf16.msra.mxu0 %v789
    %823 = vmatpush.bf16.msra.mxu0 %v785
    %824 = vmatmul.bf16.gmra.mxu0 %v801
    %v825 = vpop.f32.mrf.mxu0
    %v826 = vadd.f32 0.0, %v825
    %v827 = vpop.f32.mrf.mxu0
    %828 = vdwg.mxu0
    %829 = vmatpush.bf16.msra.mxu0 0
    %830 = vmatpush.bf16.msra.mxu0 0
    %831 = vmatpush.bf16.msra.mxu0 0
    %832 = vmatpush.bf16.msra.mxu0 0
    %833 = vmatpush.bf16.msra.mxu0 0
    %834 = vmatpush.bf16.msra.mxu0 0
    %835 = vmatpush.bf16.msra.mxu0 %v790
    %836 = vmatpush.bf16.msra.mxu0 %v786
    %837 = vmatmul.bf16.gmra.mxu0 %v801
    %v838 = vpop.f32.mrf.mxu0
    %v839 = vadd.f32 0.0, %v838
    %v840 = vpop.f32.mrf.mxu0
    %841 = vdwg.mxu0
    %842 = vmatpush.bf16.msra.mxu0 0
    %843 = vmatpush.bf16.msra.mxu0 0
    %844 = vmatpush.bf16.msra.mxu0 0
    %845 = vmatpush.bf16.msra.mxu0 0
    %846 = vmatpush.bf16.msra.mxu0 0
    %847 = vmatpush.bf16.msra.mxu0 0
    %848 = vmatpush.bf16.msra.mxu0 %v791
    %849 = vmatpush.bf16.msra.mxu0 %v787
    %850 = vmatmul.bf16.gmra.mxu0 %v801
    %v851 = vpop.f32.mrf.mxu0
    %v852 = vadd.f32 0.0, %v851
    %v853 = vpop.f32.mrf.mxu0
    %854 = vdwg.mxu0
    %s855 = scalar_lea.vmem [#allocation4], 192
    %856 = vst [vmem:[%s855] sm:$0xff] %v813
    %857 = vst [vmem:[%s855 + $0x8] sm:$0xff] %v826
    %858 = vst [vmem:[%s855 + $0x10] sm:$0xff] %v839
    %859 = vst [vmem:[%s855 + $0x18] sm:$0xff] %v852
    %s860 = scalar_lea.vmem [#allocation5], 28
    %v861 = vld [vmem:[%s860] sm:$0xf]
    %v862 = vld [vmem:[#allocation8] sm:$0xff]
    %v863 = vld [vmem:[#allocation8 + $0x8] sm:$0xff]
    %v864 = vld [vmem:[#allocation8 + $0x10] sm:$0xff]
    %v865 = vld [vmem:[#allocation8 + $0x18] sm:$0xff]
    %v866 = vld [vmem:[#allocation8 + $0x20] sm:$0xff]
    %v867 = vld [vmem:[#allocation8 + $0x28] sm:$0xff]
    %v868 = vld [vmem:[#allocation8 + $0x30] sm:$0xff]
    %v869 = vld [vmem:[#allocation8 + $0x38] sm:$0xff]
    %v878 = vunpack.c.l.b16 %v862
    %v879 = vunpack.c.h.b16 %v862
    %v880 = vunpack.c.l.b16 %v863
    %v881 = vunpack.c.h.b16 %v863
    %v882 = vunpack.c.l.b16 %v864
    %v883 = vunpack.c.h.b16 %v864
    %v884 = vunpack.c.l.b16 %v865
    %v885 = vunpack.c.h.b16 %v865
    %v886 = vunpack.c.l.b16 %v866
    %v887 = vunpack.c.h.b16 %v866
    %v888 = vunpack.c.l.b16 %v867
    %v889 = vunpack.c.h.b16 %v867
    %v890 = vunpack.c.l.b16 %v868
    %v891 = vunpack.c.h.b16 %v868
    %v892 = vunpack.c.l.b16 %v869
    %v893 = vunpack.c.h.b16 %v869
    %v894 = vpack.c.b16 %v882, %v878
    %v895 = vpack.c.b16 %v883, %v879
    %v896 = vpack.c.b16 %v884, %v880
    %v897 = vpack.c.b16 %v885, %v881
    %v898 = vpack.c.b16 %v890, %v886
    %v899 = vpack.c.b16 %v891, %v887
    %v900 = vpack.c.b16 %v892, %v888
    %v901 = vpack.c.b16 %v893, %v889
    %v911 = vsel %vm140, %v861, 0
    %913 = vmatpush.bf16.msra.mxu0 0
    %914 = vmatpush.bf16.msra.mxu0 0
    %915 = vmatpush.bf16.msra.mxu0 0
    %916 = vmatpush.bf16.msra.mxu0 0
    %917 = vmatpush.bf16.msra.mxu0 0
    %918 = vmatpush.bf16.msra.mxu0 0
    %919 = vmatpush.bf16.msra.mxu0 %v898
    %920 = vmatpush.bf16.msra.mxu0 %v894
    %921 = vmatmul.bf16.gmra.mxu0 %v911
    %v922 = vpop.f32.mrf.mxu0
    %v923 = vadd.f32 0.0, %v922
    %v924 = vpop.f32.mrf.mxu0
    %925 = vdwg.mxu0
    %926 = vmatpush.bf16.msra.mxu0 0
    %927 = vmatpush.bf16.msra.mxu0 0
    %928 = vmatpush.bf16.msra.mxu0 0
    %929 = vmatpush.bf16.msra.mxu0 0
    %930 = vmatpush.bf16.msra.mxu0 0
    %931 = vmatpush.bf16.msra.mxu0 0
    %932 = vmatpush.bf16.msra.mxu0 %v899
    %933 = vmatpush.bf16.msra.mxu0 %v895
    %934 = vmatmul.bf16.gmra.mxu0 %v911
    %v935 = vpop.f32.mrf.mxu0
    %v936 = vadd.f32 0.0, %v935
    %v937 = vpop.f32.mrf.mxu0
    %938 = vdwg.mxu0
    %939 = vmatpush.bf16.msra.mxu0 0
    %940 = vmatpush.bf16.msra.mxu0 0
    %941 = vmatpush.bf16.msra.mxu0 0
    %942 = vmatpush.bf16.msra.mxu0 0
    %943 = vmatpush.bf16.msra.mxu0 0
    %944 = vmatpush.bf16.msra.mxu0 0
    %945 = vmatpush.bf16.msra.mxu0 %v900
    %946 = vmatpush.bf16.msra.mxu0 %v896
    %947 = vmatmul.bf16.gmra.mxu0 %v911
    %v948 = vpop.f32.mrf.mxu0
    %v949 = vadd.f32 0.0, %v948
    %v950 = vpop.f32.mrf.mxu0
    %951 = vdwg.mxu0
    %952 = vmatpush.bf16.msra.mxu0 0
    %953 = vmatpush.bf16.msra.mxu0 0
    %954 = vmatpush.bf16.msra.mxu0 0
    %955 = vmatpush.bf16.msra.mxu0 0
    %956 = vmatpush.bf16.msra.mxu0 0
    %957 = vmatpush.bf16.msra.mxu0 0
    %958 = vmatpush.bf16.msra.mxu0 %v901
    %959 = vmatpush.bf16.msra.mxu0 %v897
    %960 = vmatmul.bf16.gmra.mxu0 %v911
    %v961 = vpop.f32.mrf.mxu0
    %v962 = vadd.f32 0.0, %v961
    %v963 = vpop.f32.mrf.mxu0
    %964 = vdwg.mxu0
    %s965 = scalar_lea.vmem [#allocation4], 224
    %966 = vst [vmem:[%s965] sm:$0xff] %v923
    %967 = vst [vmem:[%s965 + $0x8] sm:$0xff] %v936
    %968 = vst [vmem:[%s965 + $0x10] sm:$0xff] %v949
    %969 = vst [vmem:[%s965 + $0x18] sm:$0xff] %v962
    %v970 = vld [vmem:[#allocation2] sm:$0xff]
    %v971 = vld [vmem:[#allocation3] sm:$0xff]
    %v972 = vld [vmem:[#allocation4] sm:$0xff]
    %v973 = vld [vmem:[#allocation4 + $0x8] sm:$0xff]
    %v974 = vld [vmem:[#allocation4 + $0x10] sm:$0xff]
    %v975 = vld [vmem:[#allocation4 + $0x18] sm:$0xff]
    %v976 = vpack.c.bf16 %v970, %v970
    %v977 = vld [vmem:[#allocation10] sm:$0xff]
    %v978 = vld [vmem:[#allocation10 + $0x8] sm:$0xff]
    %v979 = vld [vmem:[#allocation10 + $0x10] sm:$0xff]
    %v980 = vld [vmem:[#allocation10 + $0x18] sm:$0xff]
    %v981 = vld [vmem:[#allocation10 + $0x20] sm:$0xff]
    %v982 = vld [vmem:[#allocation10 + $0x28] sm:$0xff]
    %v983 = vld [vmem:[#allocation10 + $0x30] sm:$0xff]
    %v984 = vld [vmem:[#allocation10 + $0x38] sm:$0xff]
    %v985 = vld [vmem:[#allocation10 + $0x40] sm:$0xff]
    %v986 = vld [vmem:[#allocation10 + $0x48] sm:$0xff]
    %v987 = vld [vmem:[#allocation10 + $0x50] sm:$0xff]
    %v988 = vld [vmem:[#allocation10 + $0x58] sm:$0xff]
    %v989 = vld [vmem:[#allocation10 + $0x60] sm:$0xff]
    %v990 = vld [vmem:[#allocation10 + $0x68] sm:$0xff]
    %v991 = vld [vmem:[#allocation10 + $0x70] sm:$0xff]
    %v992 = vld [vmem:[#allocation10 + $0x78] sm:$0xff]
    %v993 = vld [vmem:[#allocation10 + $0x80] sm:$0xff]
    %v994 = vld [vmem:[#allocation10 + $0x88] sm:$0xff]
    %v995 = vld [vmem:[#allocation10 + $0x90] sm:$0xff]
    %v996 = vld [vmem:[#allocation10 + $0x98] sm:$0xff]
    %v997 = vld [vmem:[#allocation10 + $0xa0] sm:$0xff]
    %v998 = vld [vmem:[#allocation10 + $0xa8] sm:$0xff]
    %v999 = vld [vmem:[#allocation10 + $0xb0] sm:$0xff]
    %v1000 = vld [vmem:[#allocation10 + $0xb8] sm:$0xff]
    %v1001 = vld [vmem:[#allocation10 + $0xc0] sm:$0xff]
    %v1002 = vld [vmem:[#allocation10 + $0xc8] sm:$0xff]
    %v1003 = vld [vmem:[#allocation10 + $0xd0] sm:$0xff]
    %v1004 = vld [vmem:[#allocation10 + $0xd8] sm:$0xff]
    %v1005 = vld [vmem:[#allocation10 + $0xe0] sm:$0xff]
    %v1006 = vld [vmem:[#allocation10 + $0xe8] sm:$0xff]
    %v1007 = vld [vmem:[#allocation10 + $0xf0] sm:$0xff]
    %v1008 = vld [vmem:[#allocation10 + $0xf8] sm:$0xff]
    %v1041 = vunpack.c.l.b16 %v977
    %v1042 = vunpack.c.h.b16 %v977
    %v1043 = vunpack.c.l.b16 %v978
    %v1044 = vunpack.c.h.b16 %v978
    %v1045 = vunpack.c.l.b16 %v979
    %v1046 = vunpack.c.h.b16 %v979
    %v1047 = vunpack.c.l.b16 %v980
    %v1048 = vunpack.c.h.b16 %v980
    %v1049 = vunpack.c.l.b16 %v981
    %v1050 = vunpack.c.h.b16 %v981
    %v1051 = vunpack.c.l.b16 %v982
    %v1052 = vunpack.c.h.b16 %v982
    %v1053 = vunpack.c.l.b16 %v983
    %v1054 = vunpack.c.h.b16 %v983
    %v1055 = vunpack.c.l.b16 %v984
    %v1056 = vunpack.c.h.b16 %v984
    %v1057 = vunpack.c.l.b16 %v985
    %v1058 = vunpack.c.h.b16 %v985
    %v1059 = vunpack.c.l.b16 %v986
    %v1060 = vunpack.c.h.b16 %v986
    %v1061 = vunpack.c.l.b16 %v987
    %v1062 = vunpack.c.h.b16 %v987
    %v1063 = vunpack.c.l.b16 %v988
    %v1064 = vunpack.c.h.b16 %v988
    %v1065 = vunpack.c.l.b16 %v989
    %v1066 = vunpack.c.h.b16 %v989
    %v1067 = vunpack.c.l.b16 %v990
    %v1068 = vunpack.c.h.b16 %v990
    %v1069 = vunpack.c.l.b16 %v991
    %v1070 = vunpack.c.h.b16 %v991
    %v1071 = vunpack.c.l.b16 %v992
    %v1072 = vunpack.c.h.b16 %v992
    %v1073 = vunpack.c.l.b16 %v993
    %v1074 = vunpack.c.h.b16 %v993
    %v1075 = vunpack.c.l.b16 %v994
    %v1076 = vunpack.c.h.b16 %v994
    %v1077 = vunpack.c.l.b16 %v995
    %v1078 = vunpack.c.h.b16 %v995
    %v1079 = vunpack.c.l.b16 %v996
    %v1080 = vunpack.c.h.b16 %v996
    %v1081 = vunpack.c.l.b16 %v997
    %v1082 = vunpack.c.h.b16 %v997
    %v1083 = vunpack.c.l.b16 %v998
    %v1084 = vunpack.c.h.b16 %v998
    %v1085 = vunpack.c.l.b16 %v999
    %v1086 = vunpack.c.h.b16 %v999
    %v1087 = vunpack.c.l.b16 %v1000
    %v1088 = vunpack.c.h.b16 %v1000
    %v1089 = vunpack.c.l.b16 %v1001
    %v1090 = vunpack.c.h.b16 %v1001
    %v1091 = vunpack.c.l.b16 %v1002
    %v1092 = vunpack.c.h.b16 %v1002
    %v1093 = vunpack.c.l.b16 %v1003
    %v1094 = vunpack.c.h.b16 %v1003
    %v1095 = vunpack.c.l.b16 %v1004
    %v1096 = vunpack.c.h.b16 %v1004
    %v1097 = vunpack.c.l.b16 %v1005
    %v1098 = vunpack.c.h.b16 %v1005
    %v1099 = vunpack.c.l.b16 %v1006
    %v1100 = vunpack.c.h.b16 %v1006
    %v1101 = vunpack.c.l.b16 %v1007
    %v1102 = vunpack.c.h.b16 %v1007
    %v1103 = vunpack.c.l.b16 %v1008
    %v1104 = vunpack.c.h.b16 %v1008
    %v1105 = vpack.c.b16 %v1045, %v1041
    %v1106 = vpack.c.b16 %v1046, %v1042
    %v1107 = vpack.c.b16 %v1047, %v1043
    %v1108 = vpack.c.b16 %v1048, %v1044
    %v1109 = vpack.c.b16 %v1053, %v1049
    %v1110 = vpack.c.b16 %v1054, %v1050
    %v1111 = vpack.c.b16 %v1055, %v1051
    %v1112 = vpack.c.b16 %v1056, %v1052
    %v1113 = vpack.c.b16 %v1061, %v1057
    %v1114 = vpack.c.b16 %v1062, %v1058
    %v1115 = vpack.c.b16 %v1063, %v1059
    %v1116 = vpack.c.b16 %v1064, %v1060
    %v1117 = vpack.c.b16 %v1069, %v1065
    %v1118 = vpack.c.b16 %v1070, %v1066
    %v1119 = vpack.c.b16 %v1071, %v1067
    %v1120 = vpack.c.b16 %v1072, %v1068
    %v1121 = vpack.c.b16 %v1077, %v1073
    %v1122 = vpack.c.b16 %v1078, %v1074
    %v1123 = vpack.c.b16 %v1079, %v1075
    %v1124 = vpack.c.b16 %v1080, %v1076
    %v1125 = vpack.c.b16 %v1085, %v1081
    %v1126 = vpack.c.b16 %v1086, %v1082
    %v1127 = vpack.c.b16 %v1087, %v1083
    %v1128 = vpack.c.b16 %v1088, %v1084
    %v1129 = vpack.c.b16 %v1093, %v1089
    %v1130 = vpack.c.b16 %v1094, %v1090
    %v1131 = vpack.c.b16 %v1095, %v1091
    %v1132 = vpack.c.b16 %v1096, %v1092
    %v1133 = vpack.c.b16 %v1101, %v1097
    %v1134 = vpack.c.b16 %v1102, %v1098
    %v1135 = vpack.c.b16 %v1103, %v1099
    %v1136 = vpack.c.b16 %v1104, %v1100
    %1169 = vmatpush.bf16.msra.mxu0 %v1133
    %1170 = vmatpush.bf16.msra.mxu0 %v1129
    %1171 = vmatpush.bf16.msra.mxu0 %v1125
    %1172 = vmatpush.bf16.msra.mxu0 %v1121
    %1173 = vmatpush.bf16.msra.mxu0 %v1117
    %1174 = vmatpush.bf16.msra.mxu0 %v1113
    %1175 = vmatpush.bf16.msra.mxu0 %v1109
    %1176 = vmatpush.bf16.msra.mxu0 %v1105
    %1177 = vmatmul.bf16.gmra.mxu0 %v976
    %v1178 = vpop.f32.mrf.mxu0
    %v1179 = vadd.f32 0.0, %v1178
    %v1180 = vpop.f32.mrf.mxu0
    %1181 = vdwg.mxu0
    %1182 = vmatpush.bf16.msra.mxu0 %v1134
    %1183 = vmatpush.bf16.msra.mxu0 %v1130
    %1184 = vmatpush.bf16.msra.mxu0 %v1126
    %1185 = vmatpush.bf16.msra.mxu0 %v1122
    %1186 = vmatpush.bf16.msra.mxu0 %v1118
    %1187 = vmatpush.bf16.msra.mxu0 %v1114
    %1188 = vmatpush.bf16.msra.mxu0 %v1110
    %1189 = vmatpush.bf16.msra.mxu0 %v1106
    %1190 = vmatmul.bf16.gmra.mxu0 %v976
    %v1191 = vpop.f32.mrf.mxu0
    %v1192 = vadd.f32 0.0, %v1191
    %v1193 = vpop.f32.mrf.mxu0
    %1194 = vdwg.mxu0
    %1195 = vmatpush.bf16.msra.mxu0 %v1135
    %1196 = vmatpush.bf16.msra.mxu0 %v1131
    %1197 = vmatpush.bf16.msra.mxu0 %v1127
    %1198 = vmatpush.bf16.msra.mxu0 %v1123
    %1199 = vmatpush.bf16.msra.mxu0 %v1119
    %1200 = vmatpush.bf16.msra.mxu0 %v1115
    %1201 = vmatpush.bf16.msra.mxu0 %v1111
    %1202 = vmatpush.bf16.msra.mxu0 %v1107
    %1203 = vmatmul.bf16.gmra.mxu0 %v976
    %v1204 = vpop.f32.mrf.mxu0
    %v1205 = vadd.f32 0.0, %v1204
    %v1206 = vpop.f32.mrf.mxu0
    %1207 = vdwg.mxu0
    %1208 = vmatpush.bf16.msra.mxu0 %v1136
    %1209 = vmatpush.bf16.msra.mxu0 %v1132
    %1210 = vmatpush.bf16.msra.mxu0 %v1128
    %1211 = vmatpush.bf16.msra.mxu0 %v1124
    %1212 = vmatpush.bf16.msra.mxu0 %v1120
    %1213 = vmatpush.bf16.msra.mxu0 %v1116
    %1214 = vmatpush.bf16.msra.mxu0 %v1112
    %1215 = vmatpush.bf16.msra.mxu0 %v1108
    %1216 = vmatmul.bf16.gmra.mxu0 %v976
    %v1217 = vpop.f32.mrf.mxu0
    %v1218 = vadd.f32 0.0, %v1217
    %v1219 = vpop.f32.mrf.mxu0
    %1220 = vdwg.mxu0
    %v1221 = vadd.f32 %v972, %v1179
    %v1222 = vadd.f32 %v973, %v1192
    %v1223 = vadd.f32 %v974, %v1205
    %v1224 = vadd.f32 %v975, %v1218
    %v1225 = vxor.u32 %v1221, 2147483648
    %v1226 = vmul.f32 %v1225, 1.442695
    %v1227 = vpow.pop %v1226
    %v1228 = vadd.f32 %v1227, 1.0
    %v1229 = vrcp.pop %v1228
    %v1230 = vmul.f32 %v1228, %v1229
    %v1231 = vsub.f32 1.0, %v1230
    %v1232 = vmul.f32 %v1229, %v1231
    %v1233 = vadd.f32 %v1229, %v1232
    %vm1234 = vweird.f32 %v1228
    %vm1235 = vweird.f32 %v1229
    %vm1236 = vmor %vm1234, %vm1235
    %v1237 = vsel %vm1236, %v1229, %v1233
    %v1238 = vand.u32 2147483647, %v1228
    %vm1239 = vcmp.eq.f32.partialorder %v1238, 8.507059e+37
    %v1240 = vand.u32 %v1228, 2147483648
    %v1241 = vor.u32 1.1754944e-38, %v1240
    %v1242 = vsel %vm1239, %v1241, %v1237
    %v1243 = vmul.f32 1.0, %v1242
    %v1244 = vxor.u32 %v1222, 2147483648
    %v1245 = vmul.f32 %v1244, 1.442695
    %v1246 = vpow.pop %v1245
    %v1247 = vadd.f32 %v1246, 1.0
    %v1248 = vrcp.pop %v1247
    %v1249 = vmul.f32 %v1247, %v1248
    %v1250 = vsub.f32 1.0, %v1249
    %v1251 = vmul.f32 %v1248, %v1250
    %v1252 = vadd.f32 %v1248, %v1251
    %vm1253 = vweird.f32 %v1247
    %vm1254 = vweird.f32 %v1248
    %vm1255 = vmor %vm1253, %vm1254
    %v1256 = vsel %vm1255, %v1248, %v1252
    %v1257 = vand.u32 2147483647, %v1247
    %vm1258 = vcmp.eq.f32.partialorder %v1257, 8.507059e+37
    %v1259 = vand.u32 %v1247, 2147483648
    %v1260 = vor.u32 1.1754944e-38, %v1259
    %v1261 = vsel %vm1258, %v1260, %v1256
    %v1262 = vmul.f32 1.0, %v1261
    %v1263 = vtanh.pop %v1223
    %v1264 = vxor.u32 %v1224, 2147483648
    %v1265 = vmul.f32 %v1264, 1.442695
    %v1266 = vpow.pop %v1265
    %v1267 = vadd.f32 %v1266, 1.0
    %v1268 = vrcp.pop %v1267
    %v1269 = vmul.f32 %v1267, %v1268
    %v1270 = vsub.f32 1.0, %v1269
    %v1271 = vmul.f32 %v1268, %v1270
    %v1272 = vadd.f32 %v1268, %v1271
    %vm1273 = vweird.f32 %v1267
    %vm1274 = vweird.f32 %v1268
    %vm1275 = vmor %vm1273, %vm1274
    %v1276 = vsel %vm1275, %v1268, %v1272
    %v1277 = vand.u32 2147483647, %v1267
    %vm1278 = vcmp.eq.f32.partialorder %v1277, 8.507059e+37
    %v1279 = vand.u32 %v1267, 2147483648
    %v1280 = vor.u32 1.1754944e-38, %v1279
    %v1281 = vsel %vm1278, %v1280, %v1276
    %v1282 = vmul.f32 1.0, %v1281
    %v1283 = vmul.f32 %v1262, %v971
    %v1284 = vmul.f32 %v1243, %v1263
    %v1285 = vadd.f32 %v1283, %v1284
    %v1286 = vtanh.pop %v1285
    %v1287 = vmul.f32 %v1282, %v1286
    %v1288 = vld [vmem:[%s305] sm:$0xff]
    %v1289 = vld [vmem:[%s305 + $0x8] sm:$0xff]
    %v1290 = vld [vmem:[%s305 + $0x10] sm:$0xff]
    %v1291 = vld [vmem:[%s305 + $0x18] sm:$0xff]
    %v1292 = vpack.c.bf16 %v1287, %v1287
    %1293 = vmatpush.bf16.msra.mxu0 %v1133
    %1294 = vmatpush.bf16.msra.mxu0 %v1129
    %1295 = vmatpush.bf16.msra.mxu0 %v1125
    %1296 = vmatpush.bf16.msra.mxu0 %v1121
    %1297 = vmatpush.bf16.msra.mxu0 %v1117
    %1298 = vmatpush.bf16.msra.mxu0 %v1113
    %1299 = vmatpush.bf16.msra.mxu0 %v1109
    %1300 = vmatpush.bf16.msra.mxu0 %v1105
    %1301 = vmatmul.bf16.gmra.mxu0 %v1292
    %v1302 = vpop.f32.mrf.mxu0
    %v1303 = vadd.f32 0.0, %v1302
    %v1304 = vpop.f32.mrf.mxu0
    %1305 = vdwg.mxu0
    %1306 = vmatpush.bf16.msra.mxu0 %v1134
    %1307 = vmatpush.bf16.msra.mxu0 %v1130
    %1308 = vmatpush.bf16.msra.mxu0 %v1126
    %1309 = vmatpush.bf16.msra.mxu0 %v1122
    %1310 = vmatpush.bf16.msra.mxu0 %v1118
    %1311 = vmatpush.bf16.msra.mxu0 %v1114
    %1312 = vmatpush.bf16.msra.mxu0 %v1110
    %1313 = vmatpush.bf16.msra.mxu0 %v1106
    %1314 = vmatmul.bf16.gmra.mxu0 %v1292
    %v1315 = vpop.f32.mrf.mxu0
    %v1316 = vadd.f32 0.0, %v1315
    %v1317 = vpop.f32.mrf.mxu0
    %1318 = vdwg.mxu0
    %1319 = vmatpush.bf16.msra.mxu0 %v1135
    %1320 = vmatpush.bf16.msra.mxu0 %v1131
    %1321 = vmatpush.bf16.msra.mxu0 %v1127
    %1322 = vmatpush.bf16.msra.mxu0 %v1123
    %1323 = vmatpush.bf16.msra.mxu0 %v1119
    %1324 = vmatpush.bf16.msra.mxu0 %v1115
    %1325 = vmatpush.bf16.msra.mxu0 %v1111
    %1326 = vmatpush.bf16.msra.mxu0 %v1107
    %1327 = vmatmul.bf16.gmra.mxu0 %v1292
    %v1328 = vpop.f32.mrf.mxu0
    %v1329 = vadd.f32 0.0, %v1328
    %v1330 = vpop.f32.mrf.mxu0
    %1331 = vdwg.mxu0
    %1332 = vmatpush.bf16.msra.mxu0 %v1136
    %1333 = vmatpush.bf16.msra.mxu0 %v1132
    %1334 = vmatpush.bf16.msra.mxu0 %v1128
    %1335 = vmatpush.bf16.msra.mxu0 %v1124
    %1336 = vmatpush.bf16.msra.mxu0 %v1120
    %1337 = vmatpush.bf16.msra.mxu0 %v1116
    %1338 = vmatpush.bf16.msra.mxu0 %v1112
    %1339 = vmatpush.bf16.msra.mxu0 %v1108
    %1340 = vmatmul.bf16.gmra.mxu0 %v1292
    %v1341 = vpop.f32.mrf.mxu0
    %v1342 = vadd.f32 0.0, %v1341
    %v1343 = vpop.f32.mrf.mxu0
    %1344 = vdwg.mxu0
    %v1345 = vadd.f32 %v1288, %v1303
    %v1346 = vadd.f32 %v1289, %v1316
    %v1347 = vadd.f32 %v1290, %v1329
    %v1348 = vadd.f32 %v1291, %v1342
    %v1349 = vxor.u32 %v1345, 2147483648
    %v1350 = vmul.f32 %v1349, 1.442695
    %v1351 = vpow.pop %v1350
    %v1352 = vadd.f32 %v1351, 1.0
    %v1353 = vrcp.pop %v1352
    %v1354 = vmul.f32 %v1352, %v1353
    %v1355 = vsub.f32 1.0, %v1354
    %v1356 = vmul.f32 %v1353, %v1355
    %v1357 = vadd.f32 %v1353, %v1356
    %vm1358 = vweird.f32 %v1352
    %vm1359 = vweird.f32 %v1353
    %vm1360 = vmor %vm1358, %vm1359
    %v1361 = vsel %vm1360, %v1353, %v1357
    %v1362 = vand.u32 2147483647, %v1352
    %vm1363 = vcmp.eq.f32.partialorder %v1362, 8.507059e+37
    %v1364 = vand.u32 %v1352, 2147483648
    %v1365 = vor.u32 1.1754944e-38, %v1364
    %v1366 = vsel %vm1363, %v1365, %v1361
    %v1367 = vmul.f32 1.0, %v1366
    %v1368 = vxor.u32 %v1346, 2147483648
    %v1369 = vmul.f32 %v1368, 1.442695
    %v1370 = vpow.pop %v1369
    %v1371 = vadd.f32 %v1370, 1.0
    %v1372 = vrcp.pop %v1371
    %v1373 = vmul.f32 %v1371, %v1372
    %v1374 = vsub.f32 1.0, %v1373
    %v1375 = vmul.f32 %v1372, %v1374
    %v1376 = vadd.f32 %v1372, %v1375
    %vm1377 = vweird.f32 %v1371
    %vm1378 = vweird.f32 %v1372
    %vm1379 = vmor %vm1377, %vm1378
    %v1380 = vsel %vm1379, %v1372, %v1376
    %v1381 = vand.u32 2147483647, %v1371
    %vm1382 = vcmp.eq.f32.partialorder %v1381, 8.507059e+37
    %v1383 = vand.u32 %v1371, 2147483648
    %v1384 = vor.u32 1.1754944e-38, %v1383
    %v1385 = vsel %vm1382, %v1384, %v1380
    %v1386 = vmul.f32 1.0, %v1385
    %v1387 = vtanh.pop %v1347
    %v1388 = vxor.u32 %v1348, 2147483648
    %v1389 = vmul.f32 %v1388, 1.442695
    %v1390 = vpow.pop %v1389
    %v1391 = vadd.f32 %v1390, 1.0
    %v1392 = vrcp.pop %v1391
    %v1393 = vmul.f32 %v1391, %v1392
    %v1394 = vsub.f32 1.0, %v1393
    %v1395 = vmul.f32 %v1392, %v1394
    %v1396 = vadd.f32 %v1392, %v1395
    %vm1397 = vweird.f32 %v1391
    %vm1398 = vweird.f32 %v1392
    %vm1399 = vmor %vm1397, %vm1398
    %v1400 = vsel %vm1399, %v1392, %v1396
    %v1401 = vand.u32 2147483647, %v1391
    %vm1402 = vcmp.eq.f32.partialorder %v1401, 8.507059e+37
    %v1403 = vand.u32 %v1391, 2147483648
    %v1404 = vor.u32 1.1754944e-38, %v1403
    %v1405 = vsel %vm1402, %v1404, %v1400
    %v1406 = vmul.f32 1.0, %v1405
    %v1407 = vmul.f32 %v1386, %v1285
    %v1408 = vmul.f32 %v1367, %v1387
    %v1409 = vadd.f32 %v1407, %v1408
    %v1410 = vtanh.pop %v1409
    %v1411 = vmul.f32 %v1406, %v1410
    %v1412 = vld [vmem:[%s415] sm:$0xff]
    %v1413 = vld [vmem:[%s415 + $0x8] sm:$0xff]
    %v1414 = vld [vmem:[%s415 + $0x10] sm:$0xff]
    %v1415 = vld [vmem:[%s415 + $0x18] sm:$0xff]
    %v1416 = vpack.c.bf16 %v1411, %v1411
    %1417 = vmatpush.bf16.msra.mxu0 %v1133
    %1418 = vmatpush.bf16.msra.mxu0 %v1129
    %1419 = vmatpush.bf16.msra.mxu0 %v1125
    %1420 = vmatpush.bf16.msra.mxu0 %v1121
    %1421 = vmatpush.bf16.msra.mxu0 %v1117
    %1422 = vmatpush.bf16.msra.mxu0 %v1113
    %1423 = vmatpush.bf16.msra.mxu0 %v1109
    %1424 = vmatpush.bf16.msra.mxu0 %v1105
    %1425 = vmatmul.bf16.gmra.mxu0 %v1416
    %v1426 = vpop.f32.mrf.mxu0
    %v1427 = vadd.f32 0.0, %v1426
    %v1428 = vpop.f32.mrf.mxu0
    %1429 = vdwg.mxu0
    %1430 = vmatpush.bf16.msra.mxu0 %v1134
    %1431 = vmatpush.bf16.msra.mxu0 %v1130
    %1432 = vmatpush.bf16.msra.mxu0 %v1126
    %1433 = vmatpush.bf16.msra.mxu0 %v1122
    %1434 = vmatpush.bf16.msra.mxu0 %v1118
    %1435 = vmatpush.bf16.msra.mxu0 %v1114
    %1436 = vmatpush.bf16.msra.mxu0 %v1110
    %1437 = vmatpush.bf16.msra.mxu0 %v1106
    %1438 = vmatmul.bf16.gmra.mxu0 %v1416
    %v1439 = vpop.f32.mrf.mxu0
    %v1440 = vadd.f32 0.0, %v1439
    %v1441 = vpop.f32.mrf.mxu0
    %1442 = vdwg.mxu0
    %1443 = vmatpush.bf16.msra.mxu0 %v1135
    %1444 = vmatpush.bf16.msra.mxu0 %v1131
    %1445 = vmatpush.bf16.msra.mxu0 %v1127
    %1446 = vmatpush.bf16.msra.mxu0 %v1123
    %1447 = vmatpush.bf16.msra.mxu0 %v1119
    %1448 = vmatpush.bf16.msra.mxu0 %v1115
    %1449 = vmatpush.bf16.msra.mxu0 %v1111
    %1450 = vmatpush.bf16.msra.mxu0 %v1107
    %1451 = vmatmul.bf16.gmra.mxu0 %v1416
    %v1452 = vpop.f32.mrf.mxu0
    %v1453 = vadd.f32 0.0, %v1452
    %v1454 = vpop.f32.mrf.mxu0
    %1455 = vdwg.mxu0
    %1456 = vmatpush.bf16.msra.mxu0 %v1136
    %1457 = vmatpush.bf16.msra.mxu0 %v1132
    %1458 = vmatpush.bf16.msra.mxu0 %v1128
    %1459 = vmatpush.bf16.msra.mxu0 %v1124
    %1460 = vmatpush.bf16.msra.mxu0 %v1120
    %1461 = vmatpush.bf16.msra.mxu0 %v1116
    %1462 = vmatpush.bf16.msra.mxu0 %v1112
    %1463 = vmatpush.bf16.msra.mxu0 %v1108
    %1464 = vmatmul.bf16.gmra.mxu0 %v1416
    %v1465 = vpop.f32.mrf.mxu0
    %v1466 = vadd.f32 0.0, %v1465
    %v1467 = vpop.f32.mrf.mxu0
    %1468 = vdwg.mxu0
    %v1469 = vadd.f32 %v1412, %v1427
    %v1470 = vadd.f32 %v1413, %v1440
    %v1471 = vadd.f32 %v1414, %v1453
    %v1472 = vadd.f32 %v1415, %v1466
    %v1473 = vxor.u32 %v1469, 2147483648
    %v1474 = vmul.f32 %v1473, 1.442695
    %v1475 = vpow.pop %v1474
    %v1476 = vadd.f32 %v1475, 1.0
    %v1477 = vrcp.pop %v1476
    %v1478 = vmul.f32 %v1476, %v1477
    %v1479 = vsub.f32 1.0, %v1478
    %v1480 = vmul.f32 %v1477, %v1479
    %v1481 = vadd.f32 %v1477, %v1480
    %vm1482 = vweird.f32 %v1476
    %vm1483 = vweird.f32 %v1477
    %vm1484 = vmor %vm1482, %vm1483
    %v1485 = vsel %vm1484, %v1477, %v1481
    %v1486 = vand.u32 2147483647, %v1476
    %vm1487 = vcmp.eq.f32.partialorder %v1486, 8.507059e+37
    %v1488 = vand.u32 %v1476, 2147483648
    %v1489 = vor.u32 1.1754944e-38, %v1488
    %v1490 = vsel %vm1487, %v1489, %v1485
    %v1491 = vmul.f32 1.0, %v1490
    %v1492 = vxor.u32 %v1470, 2147483648
    %v1493 = vmul.f32 %v1492, 1.442695
    %v1494 = vpow.pop %v1493
    %v1495 = vadd.f32 %v1494, 1.0
    %v1496 = vrcp.pop %v1495
    %v1497 = vmul.f32 %v1495, %v1496
    %v1498 = vsub.f32 1.0, %v1497
    %v1499 = vmul.f32 %v1496, %v1498
    %v1500 = vadd.f32 %v1496, %v1499
    %vm1501 = vweird.f32 %v1495
    %vm1502 = vweird.f32 %v1496
    %vm1503 = vmor %vm1501, %vm1502
    %v1504 = vsel %vm1503, %v1496, %v1500
    %v1505 = vand.u32 2147483647, %v1495
    %vm1506 = vcmp.eq.f32.partialorder %v1505, 8.507059e+37
    %v1507 = vand.u32 %v1495, 2147483648
    %v1508 = vor.u32 1.1754944e-38, %v1507
    %v1509 = vsel %vm1506, %v1508, %v1504
    %v1510 = vmul.f32 1.0, %v1509
    %v1511 = vtanh.pop %v1471
    %v1512 = vxor.u32 %v1472, 2147483648
    %v1513 = vmul.f32 %v1512, 1.442695
    %v1514 = vpow.pop %v1513
    %v1515 = vadd.f32 %v1514, 1.0
    %v1516 = vrcp.pop %v1515
    %v1517 = vmul.f32 %v1515, %v1516
    %v1518 = vsub.f32 1.0, %v1517
    %v1519 = vmul.f32 %v1516, %v1518
    %v1520 = vadd.f32 %v1516, %v1519
    %vm1521 = vweird.f32 %v1515
    %vm1522 = vweird.f32 %v1516
    %vm1523 = vmor %vm1521, %vm1522
    %v1524 = vsel %vm1523, %v1516, %v1520
    %v1525 = vand.u32 2147483647, %v1515
    %vm1526 = vcmp.eq.f32.partialorder %v1525, 8.507059e+37
    %v1527 = vand.u32 %v1515, 2147483648
    %v1528 = vor.u32 1.1754944e-38, %v1527
    %v1529 = vsel %vm1526, %v1528, %v1524
    %v1530 = vmul.f32 1.0, %v1529
    %v1531 = vmul.f32 %v1510, %v1409
    %v1532 = vmul.f32 %v1491, %v1511
    %v1533 = vadd.f32 %v1531, %v1532
    %v1534 = vtanh.pop %v1533
    %v1535 = vmul.f32 %v1530, %v1534
    %v1536 = vld [vmem:[%s525] sm:$0xff]
    %v1537 = vld [vmem:[%s525 + $0x8] sm:$0xff]
    %v1538 = vld [vmem:[%s525 + $0x10] sm:$0xff]
    %v1539 = vld [vmem:[%s525 + $0x18] sm:$0xff]
    %v1540 = vpack.c.bf16 %v1535, %v1535
    %1541 = vmatpush.bf16.msra.mxu0 %v1133
    %1542 = vmatpush.bf16.msra.mxu0 %v1129
    %1543 = vmatpush.bf16.msra.mxu0 %v1125
    %1544 = vmatpush.bf16.msra.mxu0 %v1121
    %1545 = vmatpush.bf16.msra.mxu0 %v1117
    %1546 = vmatpush.bf16.msra.mxu0 %v1113
    %1547 = vmatpush.bf16.msra.mxu0 %v1109
    %1548 = vmatpush.bf16.msra.mxu0 %v1105
    %1549 = vmatmul.bf16.gmra.mxu0 %v1540
    %v1550 = vpop.f32.mrf.mxu0
    %v1551 = vadd.f32 0.0, %v1550
    %v1552 = vpop.f32.mrf.mxu0
    %1553 = vdwg.mxu0
    %1554 = vmatpush.bf16.msra.mxu0 %v1134
    %1555 = vmatpush.bf16.msra.mxu0 %v1130
    %1556 = vmatpush.bf16.msra.mxu0 %v1126
    %1557 = vmatpush.bf16.msra.mxu0 %v1122
    %1558 = vmatpush.bf16.msra.mxu0 %v1118
    %1559 = vmatpush.bf16.msra.mxu0 %v1114
    %1560 = vmatpush.bf16.msra.mxu0 %v1110
    %1561 = vmatpush.bf16.msra.mxu0 %v1106
    %1562 = vmatmul.bf16.gmra.mxu0 %v1540
    %v1563 = vpop.f32.mrf.mxu0
    %v1564 = vadd.f32 0.0, %v1563
    %v1565 = vpop.f32.mrf.mxu0
    %1566 = vdwg.mxu0
    %1567 = vmatpush.bf16.msra.mxu0 %v1135
    %1568 = vmatpush.bf16.msra.mxu0 %v1131
    %1569 = vmatpush.bf16.msra.mxu0 %v1127
    %1570 = vmatpush.bf16.msra.mxu0 %v1123
    %1571 = vmatpush.bf16.msra.mxu0 %v1119
    %1572 = vmatpush.bf16.msra.mxu0 %v1115
    %1573 = vmatpush.bf16.msra.mxu0 %v1111
    %1574 = vmatpush.bf16.msra.mxu0 %v1107
    %1575 = vmatmul.bf16.gmra.mxu0 %v1540
    %v1576 = vpop.f32.mrf.mxu0
    %v1577 = vadd.f32 0.0, %v1576
    %v1578 = vpop.f32.mrf.mxu0
    %1579 = vdwg.mxu0
    %1580 = vmatpush.bf16.msra.mxu0 %v1136
    %1581 = vmatpush.bf16.msra.mxu0 %v1132
    %1582 = vmatpush.bf16.msra.mxu0 %v1128
    %1583 = vmatpush.bf16.msra.mxu0 %v1124
    %1584 = vmatpush.bf16.msra.mxu0 %v1120
    %1585 = vmatpush.bf16.msra.mxu0 %v1116
    %1586 = vmatpush.bf16.msra.mxu0 %v1112
    %1587 = vmatpush.bf16.msra.mxu0 %v1108
    %1588 = vmatmul.bf16.gmra.mxu0 %v1540
    %v1589 = vpop.f32.mrf.mxu0
    %v1590 = vadd.f32 0.0, %v1589
    %v1591 = vpop.f32.mrf.mxu0
    %1592 = vdwg.mxu0
    %v1593 = vadd.f32 %v1536, %v1551
    %v1594 = vadd.f32 %v1537, %v1564
    %v1595 = vadd.f32 %v1538, %v1577
    %v1596 = vadd.f32 %v1539, %v1590
    %v1597 = vxor.u32 %v1593, 2147483648
    %v1598 = vmul.f32 %v1597, 1.442695
    %v1599 = vpow.pop %v1598
    %v1600 = vadd.f32 %v1599, 1.0
    %v1601 = vrcp.pop %v1600
    %v1602 = vmul.f32 %v1600, %v1601
    %v1603 = vsub.f32 1.0, %v1602
    %v1604 = vmul.f32 %v1601, %v1603
    %v1605 = vadd.f32 %v1601, %v1604
    %vm1606 = vweird.f32 %v1600
    %vm1607 = vweird.f32 %v1601
    %vm1608 = vmor %vm1606, %vm1607
    %v1609 = vsel %vm1608, %v1601, %v1605
    %v1610 = vand.u32 2147483647, %v1600
    %vm1611 = vcmp.eq.f32.partialorder %v1610, 8.507059e+37
    %v1612 = vand.u32 %v1600, 2147483648
    %v1613 = vor.u32 1.1754944e-38, %v1612
    %v1614 = vsel %vm1611, %v1613, %v1609
    %v1615 = vmul.f32 1.0, %v1614
    %v1616 = vxor.u32 %v1594, 2147483648
    %v1617 = vmul.f32 %v1616, 1.442695
    %v1618 = vpow.pop %v1617
    %v1619 = vadd.f32 %v1618, 1.0
    %v1620 = vrcp.pop %v1619
    %v1621 = vmul.f32 %v1619, %v1620
    %v1622 = vsub.f32 1.0, %v1621
    %v1623 = vmul.f32 %v1620, %v1622
    %v1624 = vadd.f32 %v1620, %v1623
    %vm1625 = vweird.f32 %v1619
    %vm1626 = vweird.f32 %v1620
    %vm1627 = vmor %vm1625, %vm1626
    %v1628 = vsel %vm1627, %v1620, %v1624
    %v1629 = vand.u32 2147483647, %v1619
    %vm1630 = vcmp.eq.f32.partialorder %v1629, 8.507059e+37
    %v1631 = vand.u32 %v1619, 2147483648
    %v1632 = vor.u32 1.1754944e-38, %v1631
    %v1633 = vsel %vm1630, %v1632, %v1628
    %v1634 = vmul.f32 1.0, %v1633
    %v1635 = vtanh.pop %v1595
    %v1636 = vxor.u32 %v1596, 2147483648
    %v1637 = vmul.f32 %v1636, 1.442695
    %v1638 = vpow.pop %v1637
    %v1639 = vadd.f32 %v1638, 1.0
    %v1640 = vrcp.pop %v1639
    %v1641 = vmul.f32 %v1639, %v1640
    %v1642 = vsub.f32 1.0, %v1641
    %v1643 = vmul.f32 %v1640, %v1642
    %v1644 = vadd.f32 %v1640, %v1643
    %vm1645 = vweird.f32 %v1639
    %vm1646 = vweird.f32 %v1640
    %vm1647 = vmor %vm1645, %vm1646
    %v1648 = vsel %vm1647, %v1640, %v1644
    %v1649 = vand.u32 2147483647, %v1639
    %vm1650 = vcmp.eq.f32.partialorder %v1649, 8.507059e+37
    %v1651 = vand.u32 %v1639, 2147483648
    %v1652 = vor.u32 1.1754944e-38, %v1651
    %v1653 = vsel %vm1650, %v1652, %v1648
    %v1654 = vmul.f32 1.0, %v1653
    %v1655 = vmul.f32 %v1634, %v1533
    %v1656 = vmul.f32 %v1615, %v1635
    %v1657 = vadd.f32 %v1655, %v1656
    %v1658 = vtanh.pop %v1657
    %v1659 = vmul.f32 %v1654, %v1658
    %v1660 = vld [vmem:[%s635] sm:$0xff]
    %v1661 = vld [vmem:[%s635 + $0x8] sm:$0xff]
    %v1662 = vld [vmem:[%s635 + $0x10] sm:$0xff]
    %v1663 = vld [vmem:[%s635 + $0x18] sm:$0xff]
    %v1664 = vpack.c.bf16 %v1659, %v1659
    %1665 = vmatpush.bf16.msra.mxu0 %v1133
    %1666 = vmatpush.bf16.msra.mxu0 %v1129
    %1667 = vmatpush.bf16.msra.mxu0 %v1125
    %1668 = vmatpush.bf16.msra.mxu0 %v1121
    %1669 = vmatpush.bf16.msra.mxu0 %v1117
    %1670 = vmatpush.bf16.msra.mxu0 %v1113
    %1671 = vmatpush.bf16.msra.mxu0 %v1109
    %1672 = vmatpush.bf16.msra.mxu0 %v1105
    %1673 = vmatmul.bf16.gmra.mxu0 %v1664
    %v1674 = vpop.f32.mrf.mxu0
    %v1675 = vadd.f32 0.0, %v1674
    %v1676 = vpop.f32.mrf.mxu0
    %1677 = vdwg.mxu0
    %1678 = vmatpush.bf16.msra.mxu0 %v1134
    %1679 = vmatpush.bf16.msra.mxu0 %v1130
    %1680 = vmatpush.bf16.msra.mxu0 %v1126
    %1681 = vmatpush.bf16.msra.mxu0 %v1122
    %1682 = vmatpush.bf16.msra.mxu0 %v1118
    %1683 = vmatpush.bf16.msra.mxu0 %v1114
    %1684 = vmatpush.bf16.msra.mxu0 %v1110
    %1685 = vmatpush.bf16.msra.mxu0 %v1106
    %1686 = vmatmul.bf16.gmra.mxu0 %v1664
    %v1687 = vpop.f32.mrf.mxu0
    %v1688 = vadd.f32 0.0, %v1687
    %v1689 = vpop.f32.mrf.mxu0
    %1690 = vdwg.mxu0
    %1691 = vmatpush.bf16.msra.mxu0 %v1135
    %1692 = vmatpush.bf16.msra.mxu0 %v1131
    %1693 = vmatpush.bf16.msra.mxu0 %v1127
    %1694 = vmatpush.bf16.msra.mxu0 %v1123
    %1695 = vmatpush.bf16.msra.mxu0 %v1119
    %1696 = vmatpush.bf16.msra.mxu0 %v1115
    %1697 = vmatpush.bf16.msra.mxu0 %v1111
    %1698 = vmatpush.bf16.msra.mxu0 %v1107
    %1699 = vmatmul.bf16.gmra.mxu0 %v1664
    %v1700 = vpop.f32.mrf.mxu0
    %v1701 = vadd.f32 0.0, %v1700
    %v1702 = vpop.f32.mrf.mxu0
    %1703 = vdwg.mxu0
    %1704 = vmatpush.bf16.msra.mxu0 %v1136
    %1705 = vmatpush.bf16.msra.mxu0 %v1132
    %1706 = vmatpush.bf16.msra.mxu0 %v1128
    %1707 = vmatpush.bf16.msra.mxu0 %v1124
    %1708 = vmatpush.bf16.msra.mxu0 %v1120
    %1709 = vmatpush.bf16.msra.mxu0 %v1116
    %1710 = vmatpush.bf16.msra.mxu0 %v1112
    %1711 = vmatpush.bf16.msra.mxu0 %v1108
    %1712 = vmatmul.bf16.gmra.mxu0 %v1664
    %v1713 = vpop.f32.mrf.mxu0
    %v1714 = vadd.f32 0.0, %v1713
    %v1715 = vpop.f32.mrf.mxu0
    %1716 = vdwg.mxu0
    %v1717 = vadd.f32 %v1660, %v1675
    %v1718 = vadd.f32 %v1661, %v1688
    %v1719 = vadd.f32 %v1662, %v1701
    %v1720 = vadd.f32 %v1663, %v1714
    %v1721 = vxor.u32 %v1717, 2147483648
    %v1722 = vmul.f32 %v1721, 1.442695
    %v1723 = vpow.pop %v1722
    %v1724 = vadd.f32 %v1723, 1.0
    %v1725 = vrcp.pop %v1724
    %v1726 = vmul.f32 %v1724, %v1725
    %v1727 = vsub.f32 1.0, %v1726
    %v1728 = vmul.f32 %v1725, %v1727
    %v1729 = vadd.f32 %v1725, %v1728
    %vm1730 = vweird.f32 %v1724
    %vm1731 = vweird.f32 %v1725
    %vm1732 = vmor %vm1730, %vm1731
    %v1733 = vsel %vm1732, %v1725, %v1729
    %v1734 = vand.u32 2147483647, %v1724
    %vm1735 = vcmp.eq.f32.partialorder %v1734, 8.507059e+37
    %v1736 = vand.u32 %v1724, 2147483648
    %v1737 = vor.u32 1.1754944e-38, %v1736
    %v1738 = vsel %vm1735, %v1737, %v1733
    %v1739 = vmul.f32 1.0, %v1738
    %v1740 = vxor.u32 %v1718, 2147483648
    %v1741 = vmul.f32 %v1740, 1.442695
    %v1742 = vpow.pop %v1741
    %v1743 = vadd.f32 %v1742, 1.0
    %v1744 = vrcp.pop %v1743
    %v1745 = vmul.f32 %v1743, %v1744
    %v1746 = vsub.f32 1.0, %v1745
    %v1747 = vmul.f32 %v1744, %v1746
    %v1748 = vadd.f32 %v1744, %v1747
    %vm1749 = vweird.f32 %v1743
    %vm1750 = vweird.f32 %v1744
    %vm1751 = vmor %vm1749, %vm1750
    %v1752 = vsel %vm1751, %v1744, %v1748
    %v1753 = vand.u32 2147483647, %v1743
    %vm1754 = vcmp.eq.f32.partialorder %v1753, 8.507059e+37
    %v1755 = vand.u32 %v1743, 2147483648
    %v1756 = vor.u32 1.1754944e-38, %v1755
    %v1757 = vsel %vm1754, %v1756, %v1752
    %v1758 = vmul.f32 1.0, %v1757
    %v1759 = vtanh.pop %v1719
    %v1760 = vxor.u32 %v1720, 2147483648
    %v1761 = vmul.f32 %v1760, 1.442695
    %v1762 = vpow.pop %v1761
    %v1763 = vadd.f32 %v1762, 1.0
    %v1764 = vrcp.pop %v1763
    %v1765 = vmul.f32 %v1763, %v1764
    %v1766 = vsub.f32 1.0, %v1765
    %v1767 = vmul.f32 %v1764, %v1766
    %v1768 = vadd.f32 %v1764, %v1767
    %vm1769 = vweird.f32 %v1763
    %vm1770 = vweird.f32 %v1764
    %vm1771 = vmor %vm1769, %vm1770
    %v1772 = vsel %vm1771, %v1764, %v1768
    %v1773 = vand.u32 2147483647, %v1763
    %vm1774 = vcmp.eq.f32.partialorder %v1773, 8.507059e+37
    %v1775 = vand.u32 %v1763, 2147483648
    %v1776 = vor.u32 1.1754944e-38, %v1775
    %v1777 = vsel %vm1774, %v1776, %v1772
    %v1778 = vmul.f32 1.0, %v1777
    %v1779 = vmul.f32 %v1758, %v1657
    %v1780 = vmul.f32 %v1739, %v1759
    %v1781 = vadd.f32 %v1779, %v1780
    %v1782 = vtanh.pop %v1781
    %v1783 = vmul.f32 %v1778, %v1782
    %v1784 = vld [vmem:[%s745] sm:$0xff]
    %v1785 = vld [vmem:[%s745 + $0x8] sm:$0xff]
    %v1786 = vld [vmem:[%s745 + $0x10] sm:$0xff]
    %v1787 = vld [vmem:[%s745 + $0x18] sm:$0xff]
    %v1788 = vpack.c.bf16 %v1783, %v1783
    %1789 = vmatpush.bf16.msra.mxu0 %v1133
    %1790 = vmatpush.bf16.msra.mxu0 %v1129
    %1791 = vmatpush.bf16.msra.mxu0 %v1125
    %1792 = vmatpush.bf16.msra.mxu0 %v1121
    %1793 = vmatpush.bf16.msra.mxu0 %v1117
    %1794 = vmatpush.bf16.msra.mxu0 %v1113
    %1795 = vmatpush.bf16.msra.mxu0 %v1109
    %1796 = vmatpush.bf16.msra.mxu0 %v1105
    %1797 = vmatmul.bf16.gmra.mxu0 %v1788
    %v1798 = vpop.f32.mrf.mxu0
    %v1799 = vadd.f32 0.0, %v1798
    %v1800 = vpop.f32.mrf.mxu0
    %1801 = vdwg.mxu0
    %1802 = vmatpush.bf16.msra.mxu0 %v1134
    %1803 = vmatpush.bf16.msra.mxu0 %v1130
    %1804 = vmatpush.bf16.msra.mxu0 %v1126
    %1805 = vmatpush.bf16.msra.mxu0 %v1122
    %1806 = vmatpush.bf16.msra.mxu0 %v1118
    %1807 = vmatpush.bf16.msra.mxu0 %v1114
    %1808 = vmatpush.bf16.msra.mxu0 %v1110
    %1809 = vmatpush.bf16.msra.mxu0 %v1106
    %1810 = vmatmul.bf16.gmra.mxu0 %v1788
    %v1811 = vpop.f32.mrf.mxu0
    %v1812 = vadd.f32 0.0, %v1811
    %v1813 = vpop.f32.mrf.mxu0
    %1814 = vdwg.mxu0
    %1815 = vmatpush.bf16.msra.mxu0 %v1135
    %1816 = vmatpush.bf16.msra.mxu0 %v1131
    %1817 = vmatpush.bf16.msra.mxu0 %v1127
    %1818 = vmatpush.bf16.msra.mxu0 %v1123
    %1819 = vmatpush.bf16.msra.mxu0 %v1119
    %1820 = vmatpush.bf16.msra.mxu0 %v1115
    %1821 = vmatpush.bf16.msra.mxu0 %v1111
    %1822 = vmatpush.bf16.msra.mxu0 %v1107
    %1823 = vmatmul.bf16.gmra.mxu0 %v1788
    %v1824 = vpop.f32.mrf.mxu0
    %v1825 = vadd.f32 0.0, %v1824
    %v1826 = vpop.f32.mrf.mxu0
    %1827 = vdwg.mxu0
    %1828 = vmatpush.bf16.msra.mxu0 %v1136
    %1829 = vmatpush.bf16.msra.mxu0 %v1132
    %1830 = vmatpush.bf16.msra.mxu0 %v1128
    %1831 = vmatpush.bf16.msra.mxu0 %v1124
    %1832 = vmatpush.bf16.msra.mxu0 %v1120
    %1833 = vmatpush.bf16.msra.mxu0 %v1116
    %1834 = vmatpush.bf16.msra.mxu0 %v1112
    %1835 = vmatpush.bf16.msra.mxu0 %v1108
    %1836 = vmatmul.bf16.gmra.mxu0 %v1788
    %v1837 = vpop.f32.mrf.mxu0
    %v1838 = vadd.f32 0.0, %v1837
    %v1839 = vpop.f32.mrf.mxu0
    %1840 = vdwg.mxu0
    %v1841 = vadd.f32 %v1784, %v1799
    %v1842 = vadd.f32 %v1785, %v1812
    %v1843 = vadd.f32 %v1786, %v1825
    %v1844 = vadd.f32 %v1787, %v1838
    %v1845 = vxor.u32 %v1841, 2147483648
    %v1846 = vmul.f32 %v1845, 1.442695
    %v1847 = vpow.pop %v1846
    %v1848 = vadd.f32 %v1847, 1.0
    %v1849 = vrcp.pop %v1848
    %v1850 = vmul.f32 %v1848, %v1849
    %v1851 = vsub.f32 1.0, %v1850
    %v1852 = vmul.f32 %v1849, %v1851
    %v1853 = vadd.f32 %v1849, %v1852
    %vm1854 = vweird.f32 %v1848
    %vm1855 = vweird.f32 %v1849
    %vm1856 = vmor %vm1854, %vm1855
    %v1857 = vsel %vm1856, %v1849, %v1853
    %v1858 = vand.u32 2147483647, %v1848
    %vm1859 = vcmp.eq.f32.partialorder %v1858, 8.507059e+37
    %v1860 = vand.u32 %v1848, 2147483648
    %v1861 = vor.u32 1.1754944e-38, %v1860
    %v1862 = vsel %vm1859, %v1861, %v1857
    %v1863 = vmul.f32 1.0, %v1862
    %v1864 = vxor.u32 %v1842, 2147483648
    %v1865 = vmul.f32 %v1864, 1.442695
    %v1866 = vpow.pop %v1865
    %v1867 = vadd.f32 %v1866, 1.0
    %v1868 = vrcp.pop %v1867
    %v1869 = vmul.f32 %v1867, %v1868
    %v1870 = vsub.f32 1.0, %v1869
    %v1871 = vmul.f32 %v1868, %v1870
    %v1872 = vadd.f32 %v1868, %v1871
    %vm1873 = vweird.f32 %v1867
    %vm1874 = vweird.f32 %v1868
    %vm1875 = vmor %vm1873, %vm1874
    %v1876 = vsel %vm1875, %v1868, %v1872
    %v1877 = vand.u32 2147483647, %v1867
    %vm1878 = vcmp.eq.f32.partialorder %v1877, 8.507059e+37
    %v1879 = vand.u32 %v1867, 2147483648
    %v1880 = vor.u32 1.1754944e-38, %v1879
    %v1881 = vsel %vm1878, %v1880, %v1876
    %v1882 = vmul.f32 1.0, %v1881
    %v1883 = vtanh.pop %v1843
    %v1884 = vxor.u32 %v1844, 2147483648
    %v1885 = vmul.f32 %v1884, 1.442695
    %v1886 = vpow.pop %v1885
    %v1887 = vadd.f32 %v1886, 1.0
    %v1888 = vrcp.pop %v1887
    %v1889 = vmul.f32 %v1887, %v1888
    %v1890 = vsub.f32 1.0, %v1889
    %v1891 = vmul.f32 %v1888, %v1890
    %v1892 = vadd.f32 %v1888, %v1891
    %vm1893 = vweird.f32 %v1887
    %vm1894 = vweird.f32 %v1888
    %vm1895 = vmor %vm1893, %vm1894
    %v1896 = vsel %vm1895, %v1888, %v1892
    %v1897 = vand.u32 2147483647, %v1887
    %vm1898 = vcmp.eq.f32.partialorder %v1897, 8.507059e+37
    %v1899 = vand.u32 %v1887, 2147483648
    %v1900 = vor.u32 1.1754944e-38, %v1899
    %v1901 = vsel %vm1898, %v1900, %v1896
    %v1902 = vmul.f32 1.0, %v1901
    %v1903 = vmul.f32 %v1882, %v1781
    %v1904 = vmul.f32 %v1863, %v1883
    %v1905 = vadd.f32 %v1903, %v1904
    %v1906 = vtanh.pop %v1905
    %v1907 = vmul.f32 %v1902, %v1906
    %v1908 = vld [vmem:[%s855] sm:$0xff]
    %v1909 = vld [vmem:[%s855 + $0x8] sm:$0xff]
    %v1910 = vld [vmem:[%s855 + $0x10] sm:$0xff]
    %v1911 = vld [vmem:[%s855 + $0x18] sm:$0xff]
    %v1912 = vpack.c.bf16 %v1907, %v1907
    %1913 = vmatpush.bf16.msra.mxu0 %v1133
    %1914 = vmatpush.bf16.msra.mxu0 %v1129
    %1915 = vmatpush.bf16.msra.mxu0 %v1125
    %1916 = vmatpush.bf16.msra.mxu0 %v1121
    %1917 = vmatpush.bf16.msra.mxu0 %v1117
    %1918 = vmatpush.bf16.msra.mxu0 %v1113
    %1919 = vmatpush.bf16.msra.mxu0 %v1109
    %1920 = vmatpush.bf16.msra.mxu0 %v1105
    %1921 = vmatmul.bf16.gmra.mxu0 %v1912
    %v1922 = vpop.f32.mrf.mxu0
    %v1923 = vadd.f32 0.0, %v1922
    %v1924 = vpop.f32.mrf.mxu0
    %1925 = vdwg.mxu0
    %1926 = vmatpush.bf16.msra.mxu0 %v1134
    %1927 = vmatpush.bf16.msra.mxu0 %v1130
    %1928 = vmatpush.bf16.msra.mxu0 %v1126
    %1929 = vmatpush.bf16.msra.mxu0 %v1122
    %1930 = vmatpush.bf16.msra.mxu0 %v1118
    %1931 = vmatpush.bf16.msra.mxu0 %v1114
    %1932 = vmatpush.bf16.msra.mxu0 %v1110
    %1933 = vmatpush.bf16.msra.mxu0 %v1106
    %1934 = vmatmul.bf16.gmra.mxu0 %v1912
    %v1935 = vpop.f32.mrf.mxu0
    %v1936 = vadd.f32 0.0, %v1935
    %v1937 = vpop.f32.mrf.mxu0
    %1938 = vdwg.mxu0
    %1939 = vmatpush.bf16.msra.mxu0 %v1135
    %1940 = vmatpush.bf16.msra.mxu0 %v1131
    %1941 = vmatpush.bf16.msra.mxu0 %v1127
    %1942 = vmatpush.bf16.msra.mxu0 %v1123
    %1943 = vmatpush.bf16.msra.mxu0 %v1119
    %1944 = vmatpush.bf16.msra.mxu0 %v1115
    %1945 = vmatpush.bf16.msra.mxu0 %v1111
    %1946 = vmatpush.bf16.msra.mxu0 %v1107
    %1947 = vmatmul.bf16.gmra.mxu0 %v1912
    %v1948 = vpop.f32.mrf.mxu0
    %v1949 = vadd.f32 0.0, %v1948
    %v1950 = vpop.f32.mrf.mxu0
    %1951 = vdwg.mxu0
    %1952 = vmatpush.bf16.msra.mxu0 %v1136
    %1953 = vmatpush.bf16.msra.mxu0 %v1132
    %1954 = vmatpush.bf16.msra.mxu0 %v1128
    %1955 = vmatpush.bf16.msra.mxu0 %v1124
    %1956 = vmatpush.bf16.msra.mxu0 %v1120
    %1957 = vmatpush.bf16.msra.mxu0 %v1116
    %1958 = vmatpush.bf16.msra.mxu0 %v1112
    %1959 = vmatpush.bf16.msra.mxu0 %v1108
    %1960 = vmatmul.bf16.gmra.mxu0 %v1912
    %v1961 = vpop.f32.mrf.mxu0
    %v1962 = vadd.f32 0.0, %v1961
    %v1963 = vpop.f32.mrf.mxu0
    %1964 = vdwg.mxu0
    %v1965 = vadd.f32 %v1908, %v1923
    %v1966 = vadd.f32 %v1909, %v1936
    %v1967 = vadd.f32 %v1910, %v1949
    %v1968 = vadd.f32 %v1911, %v1962
    %v1969 = vxor.u32 %v1965, 2147483648
    %v1970 = vmul.f32 %v1969, 1.442695
    %v1971 = vpow.pop %v1970
    %v1972 = vadd.f32 %v1971, 1.0
    %v1973 = vrcp.pop %v1972
    %v1974 = vmul.f32 %v1972, %v1973
    %v1975 = vsub.f32 1.0, %v1974
    %v1976 = vmul.f32 %v1973, %v1975
    %v1977 = vadd.f32 %v1973, %v1976
    %vm1978 = vweird.f32 %v1972
    %vm1979 = vweird.f32 %v1973
    %vm1980 = vmor %vm1978, %vm1979
    %v1981 = vsel %vm1980, %v1973, %v1977
    %v1982 = vand.u32 2147483647, %v1972
    %vm1983 = vcmp.eq.f32.partialorder %v1982, 8.507059e+37
    %v1984 = vand.u32 %v1972, 2147483648
    %v1985 = vor.u32 1.1754944e-38, %v1984
    %v1986 = vsel %vm1983, %v1985, %v1981
    %v1987 = vmul.f32 1.0, %v1986
    %v1988 = vxor.u32 %v1966, 2147483648
    %v1989 = vmul.f32 %v1988, 1.442695
    %v1990 = vpow.pop %v1989
    %v1991 = vadd.f32 %v1990, 1.0
    %v1992 = vrcp.pop %v1991
    %v1993 = vmul.f32 %v1991, %v1992
    %v1994 = vsub.f32 1.0, %v1993
    %v1995 = vmul.f32 %v1992, %v1994
    %v1996 = vadd.f32 %v1992, %v1995
    %vm1997 = vweird.f32 %v1991
    %vm1998 = vweird.f32 %v1992
    %vm1999 = vmor %vm1997, %vm1998
    %v2000 = vsel %vm1999, %v1992, %v1996
    %v2001 = vand.u32 2147483647, %v1991
    %vm2002 = vcmp.eq.f32.partialorder %v2001, 8.507059e+37
    %v2003 = vand.u32 %v1991, 2147483648
    %v2004 = vor.u32 1.1754944e-38, %v2003
    %v2005 = vsel %vm2002, %v2004, %v2000
    %v2006 = vmul.f32 1.0, %v2005
    %v2007 = vtanh.pop %v1967
    %v2008 = vxor.u32 %v1968, 2147483648
    %v2009 = vmul.f32 %v2008, 1.442695
    %v2010 = vpow.pop %v2009
    %v2011 = vadd.f32 %v2010, 1.0
    %v2012 = vrcp.pop %v2011
    %v2013 = vmul.f32 %v2011, %v2012
    %v2014 = vsub.f32 1.0, %v2013
    %v2015 = vmul.f32 %v2012, %v2014
    %v2016 = vadd.f32 %v2012, %v2015
    %vm2017 = vweird.f32 %v2011
    %vm2018 = vweird.f32 %v2012
    %vm2019 = vmor %vm2017, %vm2018
    %v2020 = vsel %vm2019, %v2012, %v2016
    %v2021 = vand.u32 2147483647, %v2011
    %vm2022 = vcmp.eq.f32.partialorder %v2021, 8.507059e+37
    %v2023 = vand.u32 %v2011, 2147483648
    %v2024 = vor.u32 1.1754944e-38, %v2023
    %v2025 = vsel %vm2022, %v2024, %v2020
    %v2026 = vmul.f32 1.0, %v2025
    %v2027 = vmul.f32 %v2006, %v1905
    %v2028 = vmul.f32 %v1987, %v2007
    %v2029 = vadd.f32 %v2027, %v2028
    %v2030 = vtanh.pop %v2029
    %v2031 = vmul.f32 %v2026, %v2030
    %v2032 = vld [vmem:[%s965] sm:$0xff]
    %v2033 = vld [vmem:[%s965 + $0x8] sm:$0xff]
    %v2034 = vld [vmem:[%s965 + $0x10] sm:$0xff]
    %v2035 = vld [vmem:[%s965 + $0x18] sm:$0xff]
    %v2036 = vpack.c.bf16 %v2031, %v2031
    %2037 = vmatpush.bf16.msra.mxu0 %v1133
    %2038 = vmatpush.bf16.msra.mxu0 %v1129
    %2039 = vmatpush.bf16.msra.mxu0 %v1125
    %2040 = vmatpush.bf16.msra.mxu0 %v1121
    %2041 = vmatpush.bf16.msra.mxu0 %v1117
    %2042 = vmatpush.bf16.msra.mxu0 %v1113
    %2043 = vmatpush.bf16.msra.mxu0 %v1109
    %2044 = vmatpush.bf16.msra.mxu0 %v1105
    %2045 = vmatmul.bf16.gmra.mxu0 %v2036
    %v2046 = vpop.f32.mrf.mxu0
    %v2047 = vadd.f32 0.0, %v2046
    %v2048 = vpop.f32.mrf.mxu0
    %2049 = vdwg.mxu0
    %2050 = vmatpush.bf16.msra.mxu0 %v1134
    %2051 = vmatpush.bf16.msra.mxu0 %v1130
    %2052 = vmatpush.bf16.msra.mxu0 %v1126
    %2053 = vmatpush.bf16.msra.mxu0 %v1122
    %2054 = vmatpush.bf16.msra.mxu0 %v1118
    %2055 = vmatpush.bf16.msra.mxu0 %v1114
    %2056 = vmatpush.bf16.msra.mxu0 %v1110
    %2057 = vmatpush.bf16.msra.mxu0 %v1106
    %2058 = vmatmul.bf16.gmra.mxu0 %v2036
    %v2059 = vpop.f32.mrf.mxu0
    %v2060 = vadd.f32 0.0, %v2059
    %v2061 = vpop.f32.mrf.mxu0
    %2062 = vdwg.mxu0
    %2063 = vmatpush.bf16.msra.mxu0 %v1135
    %2064 = vmatpush.bf16.msra.mxu0 %v1131
    %2065 = vmatpush.bf16.msra.mxu0 %v1127
    %2066 = vmatpush.bf16.msra.mxu0 %v1123
    %2067 = vmatpush.bf16.msra.mxu0 %v1119
    %2068 = vmatpush.bf16.msra.mxu0 %v1115
    %2069 = vmatpush.bf16.msra.mxu0 %v1111
    %2070 = vmatpush.bf16.msra.mxu0 %v1107
    %2071 = vmatmul.bf16.gmra.mxu0 %v2036
    %v2072 = vpop.f32.mrf.mxu0
    %v2073 = vadd.f32 0.0, %v2072
    %v2074 = vpop.f32.mrf.mxu0
    %2075 = vdwg.mxu0
    %2076 = vmatpush.bf16.msra.mxu0 %v1136
    %2077 = vmatpush.bf16.msra.mxu0 %v1132
    %2078 = vmatpush.bf16.msra.mxu0 %v1128
    %2079 = vmatpush.bf16.msra.mxu0 %v1124
    %2080 = vmatpush.bf16.msra.mxu0 %v1120
    %2081 = vmatpush.bf16.msra.mxu0 %v1116
    %2082 = vmatpush.bf16.msra.mxu0 %v1112
    %2083 = vmatpush.bf16.msra.mxu0 %v1108
    %2084 = vmatmul.bf16.gmra.mxu0 %v2036
    %v2085 = vpop.f32.mrf.mxu0
    %v2086 = vadd.f32 0.0, %v2085
    %v2087 = vpop.f32.mrf.mxu0
    %2088 = vdwg.mxu0
    %v2089 = vadd.f32 %v2032, %v2047
    %v2090 = vadd.f32 %v2033, %v2060
    %v2091 = vadd.f32 %v2034, %v2073
    %v2092 = vadd.f32 %v2035, %v2086
    %v2093 = vxor.u32 %v2089, 2147483648
    %v2094 = vmul.f32 %v2093, 1.442695
    %v2095 = vpow.pop %v2094
    %v2096 = vadd.f32 %v2095, 1.0
    %v2097 = vrcp.pop %v2096
    %v2098 = vmul.f32 %v2096, %v2097
    %v2099 = vsub.f32 1.0, %v2098
    %v2100 = vmul.f32 %v2097, %v2099
    %v2101 = vadd.f32 %v2097, %v2100
    %vm2102 = vweird.f32 %v2096
    %vm2103 = vweird.f32 %v2097
    %vm2104 = vmor %vm2102, %vm2103
    %v2105 = vsel %vm2104, %v2097, %v2101
    %v2106 = vand.u32 2147483647, %v2096
    %vm2107 = vcmp.eq.f32.partialorder %v2106, 8.507059e+37
    %v2108 = vand.u32 %v2096, 2147483648
    %v2109 = vor.u32 1.1754944e-38, %v2108
    %v2110 = vsel %vm2107, %v2109, %v2105
    %v2111 = vmul.f32 1.0, %v2110
    %v2112 = vxor.u32 %v2090, 2147483648
    %v2113 = vmul.f32 %v2112, 1.442695
    %v2114 = vpow.pop %v2113
    %v2115 = vadd.f32 %v2114, 1.0
    %v2116 = vrcp.pop %v2115
    %v2117 = vmul.f32 %v2115, %v2116
    %v2118 = vsub.f32 1.0, %v2117
    %v2119 = vmul.f32 %v2116, %v2118
    %v2120 = vadd.f32 %v2116, %v2119
    %vm2121 = vweird.f32 %v2115
    %vm2122 = vweird.f32 %v2116
    %vm2123 = vmor %vm2121, %vm2122
    %v2124 = vsel %vm2123, %v2116, %v2120
    %v2125 = vand.u32 2147483647, %v2115
    %vm2126 = vcmp.eq.f32.partialorder %v2125, 8.507059e+37
    %v2127 = vand.u32 %v2115, 2147483648
    %v2128 = vor.u32 1.1754944e-38, %v2127
    %v2129 = vsel %vm2126, %v2128, %v2124
    %v2130 = vmul.f32 1.0, %v2129
    %v2131 = vtanh.pop %v2091
    %v2132 = vxor.u32 %v2092, 2147483648
    %v2133 = vmul.f32 %v2132, 1.442695
    %v2134 = vpow.pop %v2133
    %v2135 = vadd.f32 %v2134, 1.0
    %v2136 = vrcp.pop %v2135
    %v2137 = vmul.f32 %v2135, %v2136
    %v2138 = vsub.f32 1.0, %v2137
    %v2139 = vmul.f32 %v2136, %v2138
    %v2140 = vadd.f32 %v2136, %v2139
    %vm2141 = vweird.f32 %v2135
    %vm2142 = vweird.f32 %v2136
    %vm2143 = vmor %vm2141, %vm2142
    %v2144 = vsel %vm2143, %v2136, %v2140
    %v2145 = vand.u32 2147483647, %v2135
    %vm2146 = vcmp.eq.f32.partialorder %v2145, 8.507059e+37
    %v2147 = vand.u32 %v2135, 2147483648
    %v2148 = vor.u32 1.1754944e-38, %v2147
    %v2149 = vsel %vm2146, %v2148, %v2144
    %v2150 = vmul.f32 1.0, %v2149
    %v2151 = vmul.f32 %v2130, %v2029
    %v2152 = vmul.f32 %v2111, %v2131
    %v2153 = vadd.f32 %v2151, %v2152
    %v2154 = vtanh.pop %v2153
    %v2155 = vmul.f32 %v2150, %v2154
    %2156 = vst [vmem:[#allocation2] sm:$0xff] %v2155
    %2157 = vst [vmem:[#allocation3] sm:$0xff] %v2153
    // Predicated region
    $region42: #{tpu_custom_call.1} parent=1 // pred_check
      %p2158 = pneg %p85
    $region43: #{tpu_custom_call.1} parent=1 // pred_check_branch
      %2160 = sbr.rel (%p2158) target = $region45
    $region44: #{tpu_custom_call.1} parent=1 // pred_region
      %v2161 = vpack.c.bf16 %v2155, %v2155
      %v2162 = vld [vmem:[#allocation11] sm:$0xf]
      %v2163 = vld [vmem:[#allocation11 + $0x4] sm:$0xf]
      %v2164 = vld [vmem:[#allocation11 + $0x8] sm:$0xf]
      %v2165 = vld [vmem:[#allocation11 + $0xc] sm:$0xf]
      %v2166 = vld [vmem:[#allocation11 + $0x10] sm:$0xf]
      %v2167 = vld [vmem:[#allocation11 + $0x14] sm:$0xf]
      %v2168 = vld [vmem:[#allocation11 + $0x18] sm:$0xf]
      %v2169 = vld [vmem:[#allocation11 + $0x1c] sm:$0xf]
      %v2170 = vld [vmem:[#allocation11 + $0x20] sm:$0xf]
      %v2171 = vld [vmem:[#allocation11 + $0x24] sm:$0xf]
      %v2172 = vld [vmem:[#allocation11 + $0x28] sm:$0xf]
      %v2173 = vld [vmem:[#allocation11 + $0x2c] sm:$0xf]
      %v2174 = vld [vmem:[#allocation11 + $0x30] sm:$0xf]
      %v2175 = vld [vmem:[#allocation11 + $0x34] sm:$0xf]
      %v2176 = vld [vmem:[#allocation11 + $0x38] sm:$0xf]
      %v2177 = vld [vmem:[#allocation11 + $0x3c] sm:$0xf]
      %v2178 = vld [vmem:[%s4] sm:$0x1]
      %v2180 = vperm.slane %v2178, 0
      %v2198 = vunpack.c.l.b16 %v2162
      %v2199 = vunpack.c.l.b16 %v2163
      %v2200 = vunpack.c.l.b16 %v2164
      %v2201 = vunpack.c.l.b16 %v2165
      %v2202 = vunpack.c.l.b16 %v2166
      %v2203 = vunpack.c.l.b16 %v2167
      %v2204 = vunpack.c.l.b16 %v2168
      %v2205 = vunpack.c.l.b16 %v2169
      %v2206 = vunpack.c.l.b16 %v2170
      %v2207 = vunpack.c.l.b16 %v2171
      %v2208 = vunpack.c.l.b16 %v2172
      %v2209 = vunpack.c.l.b16 %v2173
      %v2210 = vunpack.c.l.b16 %v2174
      %v2211 = vunpack.c.l.b16 %v2175
      %v2212 = vunpack.c.l.b16 %v2176
      %v2213 = vunpack.c.l.b16 %v2177
      %v2214 = vpack.c.b16 %v2199, %v2198
      %v2215 = vpack.c.b16 %v2201, %v2200
      %v2216 = vpack.c.b16 %v2203, %v2202
      %v2217 = vpack.c.b16 %v2205, %v2204
      %v2218 = vpack.c.b16 %v2207, %v2206
      %v2219 = vpack.c.b16 %v2209, %v2208
      %v2220 = vpack.c.b16 %v2211, %v2210
      %v2221 = vpack.c.b16 %v2213, %v2212
      %2230 = vmatpush.bf16.msra.mxu0 %v2221
      %2231 = vmatpush.bf16.msra.mxu0 %v2220
      %2232 = vmatpush.bf16.msra.mxu0 %v2219
      %2233 = vmatpush.bf16.msra.mxu0 %v2218
      %2234 = vmatpush.bf16.msra.mxu0 %v2217
      %2235 = vmatpush.bf16.msra.mxu0 %v2216
      %2236 = vmatpush.bf16.msra.mxu0 %v2215
      %2237 = vmatpush.bf16.msra.mxu0 %v2214
      %2238 = vmatmul.bf16.gmra.mxu0 %v2161
      %v2239 = vpop.f32.mrf.mxu0
      %v2240 = vadd.f32 %v2180, %v2239
      %v2241 = vpop.f32.mrf.mxu0
      %2242 = vdwg.mxu0
      %2243 = vmax.xlane.f32.xlu0 %v2240
      %v2244 = vpop.xlane.xlu0 %2243
      %v2245 = vsub.f32 %v2240, %v2244
      %v2246 = vmul.f32 %v2245, 1.442695
      %v2247 = vpow.pop %v2246
      %2248 = vadd.xlane.f32.xlu0 %v2247
      %v2249 = vpop.xlane.xlu0 %2248
      %v2250 = vlog2.pop %v2249
      %v2251 = vmul.f32 %v2250, 0.6931472
      %v2252 = vadd.f32 %v2251, %v2244
      %v2253 = vsub.f32 %v2240, %v2252
      %2254 = vst [vmem:[#allocation13] sm:$0xff] %v2253
    $region45: #{tpu_custom_call.1} parent=1 // pred_fallthru
      _
    // Predicated region
    $region46: #{tpu_custom_call.1} parent=1 // pred_check
      _
    $region47: #{tpu_custom_call.1} parent=1 // pred_check_branch
      %2256 = sbr.rel (0) target = $region49
    $region48: #{tpu_custom_call.1} parent=1 // pred_region
      %2258 = vsyncadd [#allocation7], 0
      %s2260 = sshll.u32 [#allocation13], 4
      %s2261 = int_to_ptr.vmem [resolvable:$true] %s2260
      %s2262 = sshll.u32 %s5, 4
      %s2263 = int_to_ptr.hbm [resolvable:$true] %s2262
      %2265 = dma.vmem_to_hbm [thread:$0]  %s2261, 128, %s2263, [#allocation7]
    $region49: #{tpu_custom_call.1} parent=1 // pred_fallthru
      _
    // Predicated region
    $region50: #{tpu_custom_call.1} parent=1 // pred_check
      _
    $region51: #{tpu_custom_call.1} parent=1 // pred_check_branch
      %2267 = sbr.rel (0) target = $region53
    $region52: #{tpu_custom_call.1} parent=1 // pred_region
      %2269 = dma.done [#allocation7], 128
    $region53: #{tpu_custom_call.1} parent=1 // pred_fallthru
      _
    %2270 = vsyncpa [#allocation6], 1
    %2271 = vsyncpa [#allocation9], 1
    %2272 = vsyncpa [#allocation12], 1
    %2273 = vsyncpa [#allocation7], 1

</llo_original>
